<compile_context>
chip_gen: v7x
topology: tpu7x:2x2x1
jax: 0.10.0
libtpu: 0.0.40
codegen_flags: <defaults>
</compile_context>

<pallas_src>
import jax
import jax.numpy as jnp
from jax import lax
from jax.experimental import pallas as pl
from jax.experimental.pallas import tpu as pltpu


# ----------------------------- Pallas kernel --------------------------------

def aoa_cls_kernel(ctx_ref, asp_ref, pooled_ref, wc_ref, wp_ref, b_ref, out_ref):
    # Per-grid-step blocks:
    #   ctx_ref    (Bt, Lc, D)
    #   asp_ref    (Bt, La, D)
    #   pooled_ref (Bt, D)
    #   wc_ref     (D, Ppad)   -- dense weight, ctx half, pre-transposed, padded
    #   wp_ref     (D, Ppad)   -- dense weight, pooled half, pre-transposed, padded
    #   b_ref      (1, Ppad)
    #   out_ref    (Bt, Ppad)
    ctx = ctx_ref[...]
    asp = asp_ref[...]
    pooled = pooled_ref[...]

    # interaction_mat[b, l, k] = sum_d ctx[b, l, d] * asp[b, k, d]   (MXU, batched)
    inter = jnp.einsum("bld,bkd->blk", ctx, asp,
                       preferred_element_type=jnp.float32)            # (Bt, Lc, La)

    # Shared exp for both softmaxes: subtract a single per-batch constant
    # (softmax over dim=1 and over dim=2 are both invariant to it).
    m = jnp.max(jnp.max(inter, axis=2, keepdims=True), axis=1, keepdims=True)  # (Bt,1,1)
    e = jnp.exp(inter - m)                                             # one EUP pass

    col_sum = jnp.sum(e, axis=1, keepdims=True)                        # (Bt, 1, La)
    row_sum = jnp.sum(e, axis=2, keepdims=True)                        # (Bt, Lc, 1)
    inv_col = 1.0 / col_sum                                            # tiny reciprocals
    inv_row = 1.0 / row_sum

    # beta = e * inv_row  (softmax over asp axis);  beta_avg = mean over ctx axis
    beta_avg = jnp.mean(e * inv_row, axis=1, keepdims=True)            # (Bt, 1, La)

    # gamma[b, l] = sum_k alpha[b, l, k] * beta_avg[b, k]
    #            = sum_k e[b, l, k] * (beta_avg[b, k] * inv_col[b, k])
    # -> VPU multiply + XLU lane reduction instead of an (Lc,La)x(La,1) MXU op.
    w_vec = beta_avg * inv_col                                         # (Bt, 1, La)
    gamma = jnp.sum(e * w_vec, axis=2, keepdims=True)                  # (Bt, Lc, 1)

    # weighted_sum[b, d] = sum_l gamma[b, l] * ctx[b, l, d]
    # -> VPU broadcast-multiply + sublane reduction instead of (1,Lc)x(Lc,D) MXU.
    ws = jnp.sum(gamma * ctx.astype(jnp.float32), axis=1)              # (Bt, D)

    # dense(concat(weighted_sum, pooled)) without an explicit concat:
    #   logits = ws @ Wc + pooled @ Wp + b     (lane-dense, Ppad-wide output)
    logits = (
        jnp.dot(ws, wc_ref[...], preferred_element_type=jnp.float32)
        + jnp.dot(pooled.astype(jnp.float32), wp_ref[...],
                  preferred_element_type=jnp.float32)
        + b_ref[...]
    )
    out_ref[...] = logits


def aoa_cls_head(ctx, asp, pooled, w_dense, b_dense, *,
                 batch_tile=8, matmul_dtype=None):
    """ctx: (B, Lc, D), asp: (B, La, D), pooled: (B, D),
       w_dense: (P, 2D) (torch nn.Linear weight), b_dense: (P,)."""
    B, Lc, D = ctx.shape
    La = asp.shape[1]
    P = w_dense.shape[0]

    # Lane-dense output: pad the polarity dim up to a multiple of 128.
    P_pad = pl.cdiv(P, 128) * 128
    wc = jnp.zeros((D, P_pad), jnp.float32).at[:, :P].set(jnp.transpose(w_dense[:, :D]))
    wp = jnp.zeros((D, P_pad), jnp.float32).at[:, :P].set(jnp.transpose(w_dense[:, D:]))
    b = jnp.zeros((1, P_pad), jnp.float32).at[0, :P].set(b_dense)

    # Batch tile: whole batch in one step if it fits, otherwise a multiple of 8
    # (keeps the 2-D pooled/output blocks (8,128)-aligned).
    if batch_tile is None or batch_tile >= B:
        bt = B
    else:
        bt = max(8, (batch_tile // 8) * 8)
    b_pad = pl.cdiv(B, bt) * bt
    if b_pad != B:
        pad = b_pad - B
        ctx = jnp.pad(ctx, ((0, pad), (0, 0), (0, 0)))
        asp = jnp.pad(asp, ((0, pad), (0, 0), (0, 0)))
        pooled = jnp.pad(pooled, ((0, pad), (0, 0)))

    # Optional bf16 cast for the MXU interaction matmul (real BERT dims on
    # v6e/v7x); softmax / reductions stay f32 inside the kernel.
    if matmul_dtype is not None:
        ctx = ctx.astype(matmul_dtype)
        asp = asp.astype(matmul_dtype)

    grid = (b_pad // bt,)
    out = pl.pallas_call(
        aoa_cls_kernel,
        out_shape=jax.ShapeDtypeStruct((b_pad, P_pad), jnp.float32),
        grid_spec=pltpu.PrefetchScalarGridSpec(
            num_scalar_prefetch=0,
            grid=grid,
            in_specs=[
                pl.BlockSpec((bt, Lc, D), lambda i: (i, 0, 0)),
                pl.BlockSpec((bt, La, D), lambda i: (i, 0, 0)),
                pl.BlockSpec((bt, D), lambda i: (i, 0)),
                pl.BlockSpec((D, P_pad), lambda i: (0, 0)),
                pl.BlockSpec((D, P_pad), lambda i: (0, 0)),
                pl.BlockSpec((1, P_pad), lambda i: (0, 0)),
            ],
            out_specs=pl.BlockSpec((bt, P_pad), lambda i: (i, 0)),
        ),
        compiler_params=pltpu.CompilerParams(
            dimension_semantics=("parallel",),
            # For real BERT dims (D=768, Lc~128) raise vmem_limit_bytes and
            # re-derive bt against v7x's 64 MiB VMEM.
        ),
    )(ctx, asp, pooled, wc, wp, b)
    return out[:B, :P]


# --------------------------- glue (plain JAX) --------------------------------

def synthetic_bert(params, token_ids, segment_ids):
    # TODO(synk): the real BERT encoder is an external submodule passed into
    # __init__; it is replaced by a deterministic embedding + tanh projection.
    h = params["tok_emb"][token_ids] + params["seg_emb"][segment_ids]
    bert_out = jnp.tanh(h @ params["w_enc"])                 # (B, L, D)
    pooled = jnp.tanh(bert_out[:, 0, :] @ params["w_pool"])  # (B, D)
    return bert_out, pooled


def aoa_cls_bert_forward(params, text_bert_indices, bert_segments_ids, max_seq_len):
    # Computed in the reference forward but never used for the output.
    ctx_len = jnp.sum(text_bert_indices[:, :-5] != 0, axis=1)
    asp_len = jnp.sum(text_bert_indices[:, -5:] != 0, axis=1)
    del ctx_len, asp_len

    bert_out, pooled = synthetic_bert(params, text_bert_indices, bert_segments_ids)
    split = max_seq_len + 1
    ctx = bert_out[:, :split, :]   # (B, max_seq_len+1, D)
    asp = bert_out[:, split:, :]   # (B, L - (max_seq_len+1), D)
    # self.dropout is identity in eval mode.
    return aoa_cls_head(ctx, asp, pooled, params["w_dense"], params["b_dense"],
                        batch_tile=8)


def aoa_cls_bert_reference(params, text_bert_indices, bert_segments_ids, max_seq_len):
    """Pure-JAX reference for a correctness check."""
    bert_out, pooled = synthetic_bert(params, text_bert_indices, bert_segments_ids)
    split = max_seq_len + 1
    ctx = bert_out[:, :split, :]
    asp = bert_out[:, split:, :]
    inter = jnp.einsum("bld,bkd->blk", ctx, asp)
    alpha = jax.nn.softmax(inter, axis=1)
    beta = jax.nn.softmax(inter, axis=2)
    beta_avg = jnp.mean(beta, axis=1, keepdims=True)           # (B, 1, La)
    gamma = jnp.einsum("blk,bok->blo", alpha, beta_avg)        # (B, Lc, 1)
    weighted_sum = jnp.einsum("bld,blo->bd", ctx, gamma)       # (B, D)
    out = jnp.concatenate([weighted_sum, pooled], axis=1)      # (B, 2D)
    return out @ params["w_dense"].T + params["b_dense"]


# --------------------------------- main --------------------------------------

if __name__ == "__main__":
    B = 16                    # batch (2 grid steps of 8 -> both v7x cores busy)
    max_seq_len = 7           # -> ctx length Lc = 8
    La = 5                    # aspect tokens
    L = max_seq_len + 1 + La  # total BERT sequence length = 13
    D = 64                    # opt.bert_dim
    P = 3                     # opt.polarities_dim
    vocab = 30

    key = jax.random.PRNGKey(0)
    ks = jax.random.split(key, 8)
    params = {
        "tok_emb": 0.02 * jax.random.normal(ks[0], (vocab, D), jnp.float32),
        "seg_emb": 0.02 * jax.random.normal(ks[1], (2, D), jnp.float32),
        "w_enc":   0.10 * jax.random.normal(ks[2], (D, D), jnp.float32),
        "w_pool":  0.10 * jax.random.normal(ks[3], (D, D), jnp.float32),
        "w_dense": 0.05 * jax.random.normal(ks[4], (P, 2 * D), jnp.float32),
        "b_dense": 0.01 * jax.random.normal(ks[5], (P,), jnp.float32),
    }

    text_bert_indices = jax.random.randint(ks[6], (B, L), 1, vocab, dtype=jnp.int32)
    # emulate some padding zeros at the end of the context portion
    text_bert_indices = text_bert_indices.at[1, max_seq_len - 1:max_seq_len + 1].set(0)
    bert_segments_ids = jnp.concatenate(
        [jnp.zeros((B, max_seq_len + 1), jnp.int32),
         jnp.ones((B, La), jnp.int32)], axis=1)

    logits = aoa_cls_bert_forward(params, text_bert_indices, bert_segments_ids,
                                  max_seq_len)
    jax.block_until_ready(logits)

    ref = aoa_cls_bert_reference(params, text_bert_indices, bert_segments_ids,
                                 max_seq_len)
    assert logits.shape == (B, P), logits.shape
    assert jnp.allclose(logits, ref, atol=1e-4, rtol=1e-4), (logits, ref)

    print("KERNEL_OK")
</pallas_src>

<mosaic_0001>
module attributes {stable_mosaic.version = 11 : i64} {
  func.func @aoa_cls_kernel(%arg0: i32, %arg1: memref<8x8x64xf32, #tpu.memory_space<vmem>>, %arg2: memref<8x5x64xf32, #tpu.memory_space<vmem>>, %arg3: memref<8x64xf32, #tpu.memory_space<vmem>>, %arg4: memref<64x128xf32, #tpu.memory_space<vmem>>, %arg5: memref<64x128xf32, #tpu.memory_space<vmem>>, %arg6: memref<1x128xf32, #tpu.memory_space<vmem>>, %arg7: memref<8x128xf32, #tpu.memory_space<vmem>>) attributes {dimension_semantics = [#tpu.dimension_semantics<parallel>], iteration_bounds = array<i64: 2>, scalar_prefetch = 0 : i64, scratch_operands = 0 : i64, tpu.core_type = #tpu.core_type<tc>, window_params = [{transform_indices = @transform_0, window_bounds = array<i64: 8, 8, 64>}, {transform_indices = @transform_1, window_bounds = array<i64: 8, 5, 64>}, {transform_indices = @transform_2, window_bounds = array<i64: 8, 64>}, {pipeline_mode = #tpu.pipeline_mode<synchronous>, transform_indices = @transform_3, window_bounds = array<i64: 64, 128>}, {pipeline_mode = #tpu.pipeline_mode<synchronous>, transform_indices = @transform_4, window_bounds = array<i64: 64, 128>}, {pipeline_mode = #tpu.pipeline_mode<synchronous>, transform_indices = @transform_5, window_bounds = array<i64: 1, 128>}, {transform_indices = @transform_6, window_bounds = array<i64: 8, 128>}]} {
    %c0 = arith.constant 0 : index
    %c0_0 = arith.constant 0 : index
    %c0_1 = arith.constant 0 : index
    %0 = vector.load %arg1[%c0, %c0_0, %c0_1] : memref<8x8x64xf32, #tpu.memory_space<vmem>>, vector<8x8x64xf32>
    %c0_2 = arith.constant 0 : index
    %c0_3 = arith.constant 0 : index
    %c0_4 = arith.constant 0 : index
    %1 = vector.load %arg2[%c0_2, %c0_3, %c0_4] : memref<8x5x64xf32, #tpu.memory_space<vmem>>, vector<8x5x64xf32>
    %c0_5 = arith.constant 0 : index
    %c0_6 = arith.constant 0 : index
    %2 = vector.load %arg3[%c0_5, %c0_6] : memref<8x64xf32, #tpu.memory_space<vmem>>, vector<8x64xf32>
    "tpu.trace_start"() <{level = 10 : i32, message = "bld,bkd->blk"}> : () -> ()
    %cst = arith.constant dense<0.000000e+00> : vector<8x8x5xf32>
    %3 = tpu.matmul %0, %1, %cst {dimension_numbers = #tpu.dot_dimension_numbers<[2], [2], [1], [1], [0, 0, 0, 1, 1, 1], [0], [0]>} : vector<8x8x64xf32>, vector<8x5x64xf32>, vector<8x8x5xf32> -> vector<8x8x5xf32>
    "tpu.trace_stop"() : () -> ()
    %cst_7 = arith.constant dense<0xFF800000> : vector<8x8xf32>
    %4 = vector.multi_reduction <maximumf>, %3, %cst_7 [2] : vector<8x8x5xf32> to vector<8x8xf32>
    %5 = vector.shape_cast %4 : vector<8x8xf32> to vector<8x8x1xf32>
    %cst_8 = arith.constant dense<0xFF800000> : vector<8x1xf32>
    %6 = vector.multi_reduction <maximumf>, %5, %cst_8 [1] : vector<8x8x1xf32> to vector<8x1xf32>
    %7 = vector.shape_cast %6 : vector<8x1xf32> to vector<8x1x1xf32>
    %8 = vector.broadcast %7 : vector<8x1x1xf32> to vector<8x8x5xf32>
    %9 = arith.subf %3, %8 : vector<8x8x5xf32>
    %10 = math.exp %9 : vector<8x8x5xf32>
    %cst_9 = arith.constant dense<0.000000e+00> : vector<8x5xf32>
    %11 = vector.multi_reduction <add>, %10, %cst_9 [1] : vector<8x8x5xf32> to vector<8x5xf32>
    %12 = vector.shape_cast %11 : vector<8x5xf32> to vector<8x1x5xf32>
    %cst_10 = arith.constant dense<0.000000e+00> : vector<8x8xf32>
    %13 = vector.multi_reduction <add>, %10, %cst_10 [2] : vector<8x8x5xf32> to vector<8x8xf32>
    %14 = vector.shape_cast %13 : vector<8x8xf32> to vector<8x8x1xf32>
    %cst_11 = arith.constant 1.000000e+00 : f32
    %15 = vector.broadcast %cst_11 : f32 to vector<8x1x5xf32>
    %16 = arith.divf %15, %12 : vector<8x1x5xf32>
    %cst_12 = arith.constant 1.000000e+00 : f32
    %17 = vector.broadcast %cst_12 : f32 to vector<8x8x1xf32>
    %18 = arith.divf %17, %14 : vector<8x8x1xf32>
    %19 = vector.broadcast %18 : vector<8x8x1xf32> to vector<8x8x5xf32>
    %20 = arith.mulf %10, %19 : vector<8x8x5xf32>
    %cst_13 = arith.constant dense<0.000000e+00> : vector<8x5xf32>
    %21 = vector.multi_reduction <add>, %20, %cst_13 [1] : vector<8x8x5xf32> to vector<8x5xf32>
    %22 = vector.shape_cast %21 : vector<8x5xf32> to vector<8x1x5xf32>
    %cst_14 = arith.constant 8.000000e+00 : f32
    %23 = vector.broadcast %cst_14 : f32 to vector<8x1x5xf32>
    %24 = arith.divf %22, %23 : vector<8x1x5xf32>
    %25 = arith.mulf %24, %16 : vector<8x1x5xf32>
    %26 = vector.broadcast %25 : vector<8x1x5xf32> to vector<8x8x5xf32>
    %27 = arith.mulf %10, %26 : vector<8x8x5xf32>
    %cst_15 = arith.constant dense<0.000000e+00> : vector<8x8xf32>
    %28 = vector.multi_reduction <add>, %27, %cst_15 [2] : vector<8x8x5xf32> to vector<8x8xf32>
    %29 = vector.shape_cast %28 : vector<8x8xf32> to vector<8x8x1xf32>
    %30 = vector.broadcast %29 : vector<8x8x1xf32> to vector<8x8x64xf32>
    %31 = arith.mulf %30, %0 : vector<8x8x64xf32>
    %cst_16 = arith.constant dense<0.000000e+00> : vector<8x64xf32>
    %32 = vector.multi_reduction <add>, %31, %cst_16 [1] : vector<8x8x64xf32> to vector<8x64xf32>
    %c0_17 = arith.constant 0 : index
    %c0_18 = arith.constant 0 : index
    %33 = vector.load %arg4[%c0_17, %c0_18] : memref<64x128xf32, #tpu.memory_space<vmem>>, vector<64x128xf32>
    %cst_19 = arith.constant dense<0.000000e+00> : vector<8x128xf32>
    %34 = tpu.matmul %32, %33, %cst_19 {dimension_numbers = #tpu.dot_dimension_numbers<[1], [0], [0], [1], [0, 0, 1, 1], [], []>} : vector<8x64xf32>, vector<64x128xf32>, vector<8x128xf32> -> vector<8x128xf32>
    %c0_20 = arith.constant 0 : index
    %c0_21 = arith.constant 0 : index
    %35 = vector.load %arg5[%c0_20, %c0_21] : memref<64x128xf32, #tpu.memory_space<vmem>>, vector<64x128xf32>
    %cst_22 = arith.constant dense<0.000000e+00> : vector<8x128xf32>
    %36 = tpu.matmul %2, %35, %cst_22 {dimension_numbers = #tpu.dot_dimension_numbers<[1], [0], [0], [1], [0, 0, 1, 1], [], []>} : vector<8x64xf32>, vector<64x128xf32>, vector<8x128xf32> -> vector<8x128xf32>
    %37 = arith.addf %34, %36 : vector<8x128xf32>
    %c0_23 = arith.constant 0 : index
    %c0_24 = arith.constant 0 : index
    %38 = vector.load %arg6[%c0_23, %c0_24] : memref<1x128xf32, #tpu.memory_space<vmem>>, vector<1x128xf32>
    %39 = vector.broadcast %38 : vector<1x128xf32> to vector<8x128xf32>
    %40 = arith.addf %37, %39 : vector<8x128xf32>
    %c0_25 = arith.constant 0 : index
    %c0_26 = arith.constant 0 : index
    %41 = vector.load %arg7[%c0_25, %c0_26] : memref<8x128xf32, #tpu.memory_space<vmem>>, vector<8x128xf32>
    tpu.vector_store %arg7[%c0_25, %c0_26], %40 {strides = array<i32>} : memref<8x128xf32, #tpu.memory_space<vmem>>, vector<8x128xf32>,
    return
  }
  func.func @transform_0(%arg0: i32) -> (i32, i32, i32) {
    %c0_i32 = arith.constant 0 : i32
    %c0_i32_0 = arith.constant 0 : i32
    %c0_i32_1 = arith.constant 0 : i32
    return %arg0, %c0_i32, %c0_i32_0 : i32, i32, i32
  }
  func.func @transform_1(%arg0: i32) -> (i32, i32, i32) {
    %c0_i32 = arith.constant 0 : i32
    %c0_i32_0 = arith.constant 0 : i32
    %c0_i32_1 = arith.constant 0 : i32
    return %arg0, %c0_i32, %c0_i32_0 : i32, i32, i32
  }
  func.func @transform_2(%arg0: i32) -> (i32, i32) {
    %c0_i32 = arith.constant 0 : i32
    %c0_i32_0 = arith.constant 0 : i32
    return %arg0, %c0_i32 : i32, i32
  }
  func.func @transform_3(%arg0: i32) -> (i32, i32) {
    %c0_i32 = arith.constant 0 : i32
    %c0_i32_0 = arith.constant 0 : i32
    %c0_i32_1 = arith.constant 0 : i32
    return %c0_i32, %c0_i32_0 : i32, i32
  }
  func.func @transform_4(%arg0: i32) -> (i32, i32) {
    %c0_i32 = arith.constant 0 : i32
    %c0_i32_0 = arith.constant 0 : i32
    %c0_i32_1 = arith.constant 0 : i32
    return %c0_i32, %c0_i32_0 : i32, i32
  }
  func.func @transform_5(%arg0: i32) -> (i32, i32) {
    %c0_i32 = arith.constant 0 : i32
    %c0_i32_0 = arith.constant 0 : i32
    %c0_i32_1 = arith.constant 0 : i32
    return %c0_i32, %c0_i32_0 : i32, i32
  }
  func.func @transform_6(%arg0: i32) -> (i32, i32) {
    %c0_i32 = arith.constant 0 : i32
    %c0_i32_0 = arith.constant 0 : i32
    return %arg0, %c0_i32 : i32, i32
  }
}

</mosaic_0001>

<llo_original>
// kernel: tpu_custom_call.1
$region0: #{tpu_custom_call.1}
  #allocation0 [shape = 'u32[]', space=smem, size = 0x4, offset = 0x4, fixed_abs, tag = 'smem constant byte address 0x4 - core index']
  #allocation1 [shape = 'u32[144,128]{1,0:T(1,128)}', space=vmem, size = 0x12000, scoped, tag = 'internal scratch']
  %s0 = inlined_call_operand.vmem [shape: f32[16,8,64], index: 0, kind: input, shape index: {}]
  %s1 = inlined_call_operand.vmem [shape: f32[16,5,64], index: 1, kind: input, shape index: {}]
  %s2 = inlined_call_operand.vmem [shape: f32[16,64], index: 2, kind: input, shape index: {}]
  %s3 = inlined_call_operand.vmem [shape: f32[64,128], index: 3, kind: input, shape index: {}]
  %s4 = inlined_call_operand.hbm [shape: f32[64,128], index: 4, kind: input, shape index: {}]
  %s5 = inlined_call_operand.vmem [shape: f32[1,128], index: 5, kind: input, shape index: {}]
  %s6 = inlined_call_operand.hbm [shape: f32[16,128], index: 6, kind: output, shape index: {}]
  %s7 = sld [smem:[#allocation0]]
  $region61: #{tpu_custom_call.1} parent=0
    _
  %s9 = ssub.s32 1, %s7
  %s10 = scalar_select 0, %s9, %s7
  $region1: #{tpu_custom_call.1} parent=0
    #allocation2 [shape = 'u8[32768]{0}', space=vmem, size = 0x8000, scoped, tag = 'input window, operand 4, single buffered']
    #allocation3 [shape = 's32[2]{0}', space=sflag, size = 0x8, scoped, tag = 'scoped memory for tpu_custom_call.1']
    #allocation4 [shape = 's32[2]{0}', space=sflag, size = 0x8, scoped, tag = 'scoped memory for tpu_custom_call.1']
    #allocation5 [shape = 'u8[8192]{0}', space=vmem, size = 0x2000, scoped, tag = 'output window, operand 0']
    %11 = vsyncpa [#allocation3], 0
    %12 = vsyncpa [#allocation4], 0
    %s13 = scalar_lea.sflag [#allocation4], 1
    %14 = vsyncpa %s13, 0
    loop: start=0, step=1, limit=4
    $region2: #{tpu_custom_call.1} parent=1 // loop_pre_header
      _
    $region3: #{tpu_custom_call.1} parent=1 // loop_header
      %s16 = sphi 0, %s20
      %p17 = scmp.ge.s32.totalorder %s16, 4
      %s26 = sphi 0, %s28
      %s29 = sphi 0, %s26
      %s30 = sphi 0, %s29
      %s46 = sphi 0, %s30
      %s52 = sphi 0, %s54
      %s55 = sphi 0, %s52
      %s56 = sphi 0, %s55
      %s72 = sphi 0, %s56
      %s78 = sphi 0, %s80
      %s81 = sphi 0, %s78
      %s82 = sphi 0, %s81
      %s98 = sphi 0, %s82
      %s102 = sphi 0, %s102
      %s104 = sphi 0, %s102
      %s105 = sphi 0, %s104
      %s119 = sphi 0, %s105
      %s123 = sphi 0, %s123
      %s125 = sphi 0, %s123
      %s126 = sphi 0, %s125
      %s140 = sphi 0, %s126
      %s144 = sphi 0, %s144
      %s146 = sphi 0, %s144
      %s147 = sphi 0, %s146
      %s161 = sphi 0, %s147
      %s167 = sphi 0, %s169
      %s170 = sphi 0, %s167
      %s171 = sphi 0, %s170
      %s187 = sphi 0, %s171
    $region4: #{tpu_custom_call.1} parent=1 // loop_header_branch
      %19 = sbr.rel (%p17) target = $region8
    $region5: #{tpu_custom_call.1} parent=1 // loop_body
      %s21 = ssub.s32 %s16, 1
      %s22 = ssub.s32 %s16, 2
      %s23 = sadd.s32 %s16, 1
      %s24 = ssub.s32 %s16, %s23
      %p25 = scmp.eq.s32.totalorder %s24, 0
      %s27 = sadd.s32 %s26, 1
      %s28 = scalar_select %p25, %s26, %s27
      %p31 = pneg %p25
      %p32 = scmp.eq.s32.totalorder %s16, 1
      %p33 = por %p31, %p32
      %p34 = scmp.ne.s32.totalorder %s26, %s29
      %p35 = scmp.eq.s32.totalorder %s16, 0
      %p36 = por %p34, %p35
      %p37 = scmp.ne.s32.totalorder %s26, %s29
      %p38 = scmp.eq.s32.totalorder %s21, 1
      %p39 = por %p37, %p38
      %p40 = scmp.ne.s32.totalorder %s29, %s30
      %p41 = scmp.eq.s32.totalorder %s21, 0
      %p42 = por %p40, %p41
      %p43 = scmp.ne.s32.totalorder %s29, %s30
      %p44 = scmp.eq.s32.totalorder %s22, 1
      %p45 = por %p43, %p44
      %p47 = scmp.ne.s32.totalorder %s30, %s46
      %p48 = scmp.eq.s32.totalorder %s22, 0
      %p49 = por %p47, %p48
      %s50 = ssub.s32 %s16, %s23
      %p51 = scmp.eq.s32.totalorder %s50, 0
      %s53 = sadd.s32 %s52, 1
      %s54 = scalar_select %p51, %s52, %s53
      %p57 = pneg %p51
      %p58 = scmp.eq.s32.totalorder %s16, 1
      %p59 = por %p57, %p58
      %p60 = scmp.ne.s32.totalorder %s52, %s55
      %p61 = scmp.eq.s32.totalorder %s16, 0
      %p62 = por %p60, %p61
      %p63 = scmp.ne.s32.totalorder %s52, %s55
      %p64 = scmp.eq.s32.totalorder %s21, 1
      %p65 = por %p63, %p64
      %p66 = scmp.ne.s32.totalorder %s55, %s56
      %p67 = scmp.eq.s32.totalorder %s21, 0
      %p68 = por %p66, %p67
      %p69 = scmp.ne.s32.totalorder %s55, %s56
      %p70 = scmp.eq.s32.totalorder %s22, 1
      %p71 = por %p69, %p70
      %p73 = scmp.ne.s32.totalorder %s56, %s72
      %p74 = scmp.eq.s32.totalorder %s22, 0
      %p75 = por %p73, %p74
      %s76 = ssub.s32 %s16, %s23
      %p77 = scmp.eq.s32.totalorder %s76, 0
      %s79 = sadd.s32 %s78, 1
      %s80 = scalar_select %p77, %s78, %s79
      %p83 = pneg %p77
      %p84 = scmp.eq.s32.totalorder %s16, 1
      %p85 = por %p83, %p84
      %p86 = scmp.ne.s32.totalorder %s78, %s81
      %p87 = scmp.eq.s32.totalorder %s16, 0
      %p88 = por %p86, %p87
      %p89 = scmp.ne.s32.totalorder %s78, %s81
      %p90 = scmp.eq.s32.totalorder %s21, 1
      %p91 = por %p89, %p90
      %p92 = scmp.ne.s32.totalorder %s81, %s82
      %p93 = scmp.eq.s32.totalorder %s21, 0
      %p94 = por %p92, %p93
      %p95 = scmp.ne.s32.totalorder %s81, %s82
      %p96 = scmp.eq.s32.totalorder %s22, 1
      %p97 = por %p95, %p96
      %p99 = scmp.ne.s32.totalorder %s82, %s98
      %p100 = scmp.eq.s32.totalorder %s22, 0
      %p101 = por %p99, %p100
      %s103 = sadd.s32 %s102, 1
      %p106 = scmp.eq.s32.totalorder %s16, 1
      %p107 = scmp.ne.s32.totalorder %s102, %s104
      %p108 = scmp.eq.s32.totalorder %s16, 0
      %p109 = por %p107, %p108
      %p110 = scmp.ne.s32.totalorder %s102, %s104
      %p111 = scmp.eq.s32.totalorder %s21, 1
      %p112 = por %p110, %p111
      %p113 = scmp.ne.s32.totalorder %s104, %s105
      %p114 = scmp.eq.s32.totalorder %s21, 0
      %p115 = por %p113, %p114
      %p116 = scmp.ne.s32.totalorder %s104, %s105
      %p117 = scmp.eq.s32.totalorder %s22, 1
      %p118 = por %p116, %p117
      %p120 = scmp.ne.s32.totalorder %s105, %s119
      %p121 = scmp.eq.s32.totalorder %s22, 0
      %p122 = por %p120, %p121
      %s124 = sadd.s32 %s123, 1
      %p127 = scmp.eq.s32.totalorder %s16, 1
      %p128 = scmp.ne.s32.totalorder %s123, %s125
      %p129 = scmp.eq.s32.totalorder %s16, 0
      %p130 = por %p128, %p129
      %p131 = scmp.ne.s32.totalorder %s123, %s125
      %p132 = scmp.eq.s32.totalorder %s21, 1
      %p133 = por %p131, %p132
      %p134 = scmp.ne.s32.totalorder %s125, %s126
      %p135 = scmp.eq.s32.totalorder %s21, 0
      %p136 = por %p134, %p135
      %p137 = scmp.ne.s32.totalorder %s125, %s126
      %p138 = scmp.eq.s32.totalorder %s22, 1
      %p139 = por %p137, %p138
      %p141 = scmp.ne.s32.totalorder %s126, %s140
      %p142 = scmp.eq.s32.totalorder %s22, 0
      %p143 = por %p141, %p142
      %s145 = sadd.s32 %s144, 1
      %p148 = scmp.eq.s32.totalorder %s16, 1
      %p149 = scmp.ne.s32.totalorder %s144, %s146
      %p150 = scmp.eq.s32.totalorder %s16, 0
      %p151 = por %p149, %p150
      %p152 = scmp.ne.s32.totalorder %s144, %s146
      %p153 = scmp.eq.s32.totalorder %s21, 1
      %p154 = por %p152, %p153
      %p155 = scmp.ne.s32.totalorder %s146, %s147
      %p156 = scmp.eq.s32.totalorder %s21, 0
      %p157 = por %p155, %p156
      %p158 = scmp.ne.s32.totalorder %s146, %s147
      %p159 = scmp.eq.s32.totalorder %s22, 1
      %p160 = por %p158, %p159
      %p162 = scmp.ne.s32.totalorder %s147, %s161
      %p163 = scmp.eq.s32.totalorder %s22, 0
      %p164 = por %p162, %p163
      %s165 = ssub.s32 %s16, %s23
      %p166 = scmp.eq.s32.totalorder %s165, 0
      %s168 = sadd.s32 %s167, 1
      %s169 = scalar_select %p166, %s167, %s168
      %p172 = pneg %p166
      %p173 = scmp.eq.s32.totalorder %s16, 1
      %p174 = por %p172, %p173
      %p175 = scmp.ne.s32.totalorder %s167, %s170
      %p176 = scmp.eq.s32.totalorder %s16, 0
      %p177 = por %p175, %p176
      %p178 = scmp.ne.s32.totalorder %s167, %s170
      %p179 = scmp.eq.s32.totalorder %s21, 1
      %p180 = por %p178, %p179
      %p181 = scmp.ne.s32.totalorder %s170, %s171
      %p182 = scmp.eq.s32.totalorder %s21, 0
      %p183 = por %p181, %p182
      %p184 = scmp.ne.s32.totalorder %s170, %s171
      %p185 = scmp.eq.s32.totalorder %s22, 1
      %p186 = por %p184, %p185
      %p188 = scmp.ne.s32.totalorder %s171, %s187
      %p189 = scmp.eq.s32.totalorder %s22, 0
      %p190 = por %p188, %p189
      %p191 = scmp.le.s32.totalorder 1, %s16
      %p192 = scmp.lt.s32.totalorder %s16, 3
      %p193 = pnand %p191, %p192
      %p194 = pneg %p193
      // Predicated region
      $region9: #{tpu_custom_call.1} parent=5 // pred_check
        _
      $region10: #{tpu_custom_call.1} parent=5 // pred_check_branch
        %196 = sbr.rel (%p193) target = $region12
      $region11: #{tpu_custom_call.1} parent=5 // pred_region
        %s197 = ssub.s32 %s16, 1
        // Predicated region
        $region13: #{tpu_custom_call.1} parent=11 // pred_check
          %p198 = pneg %p115
        $region14: #{tpu_custom_call.1} parent=11 // pred_check_branch
          %200 = sbr.rel (%p198) target = $region16
        $region15: #{tpu_custom_call.1} parent=11 // pred_region
          _
        $region16: #{tpu_custom_call.1} parent=11 // pred_fallthru
          _
        // Predicated region
        $region17: #{tpu_custom_call.1} parent=11 // pred_check
          %p201 = pneg %p136
        $region18: #{tpu_custom_call.1} parent=11 // pred_check_branch
          %203 = sbr.rel (%p201) target = $region20
        $region19: #{tpu_custom_call.1} parent=11 // pred_region
          %s205 = ssub.s32 1024, 1024
          %206 = vsyncadd [#allocation3], %s205
          %s207 = sshll.u32 [#allocation2], 4
          %s208 = int_to_ptr.vmem [resolvable:$true] %s207
          %213 = dma.hbm_to_vmem [thread:$0]  %s4, 1024, %s208, [#allocation3], 128, 128, 8
        $region20: #{tpu_custom_call.1} parent=11 // pred_fallthru
          _
        // Predicated region
        $region21: #{tpu_custom_call.1} parent=11 // pred_check
          %p214 = pneg %p157
        $region22: #{tpu_custom_call.1} parent=11 // pred_check_branch
          %216 = sbr.rel (%p214) target = $region24
        $region23: #{tpu_custom_call.1} parent=11 // pred_region
          _
        $region24: #{tpu_custom_call.1} parent=11 // pred_fallthru
          _
      $region12: #{tpu_custom_call.1} parent=5 // pred_fallthru
        _
      %p217 = scmp.lt.s32.totalorder %s16, 2
      // Predicated region
      $region25: #{tpu_custom_call.1} parent=5 // pred_check
        %p218 = pneg %p217
      $region26: #{tpu_custom_call.1} parent=5 // pred_check_branch
        %220 = sbr.rel (%p218) target = $region28
      $region27: #{tpu_custom_call.1} parent=5 // pred_region
        // Predicated region
        $region29: #{tpu_custom_call.1} parent=27 // pred_check
          %p221 = pneg %p36
        $region30: #{tpu_custom_call.1} parent=27 // pred_check_branch
          %223 = sbr.rel (%p221) target = $region32
        $region31: #{tpu_custom_call.1} parent=27 // pred_region
          %s224 = smul.u32 8, %s16
          %p225 = scmp.lt.s32.totalorder %s224, 15
          %s226 = scalar_select %p225, %s224, 15
          %s227 = smul.addr %s226, 8
          %s228 = scalar_lea.vmem %s0, %s227
          %s229 = smul.u32 8, %s16
        $region32: #{tpu_custom_call.1} parent=27 // pred_fallthru
          _
        // Predicated region
        $region33: #{tpu_custom_call.1} parent=27 // pred_check
          %p230 = pneg %p62
        $region34: #{tpu_custom_call.1} parent=27 // pred_check_branch
          %232 = sbr.rel (%p230) target = $region36
        $region35: #{tpu_custom_call.1} parent=27 // pred_region
          %s233 = smul.u32 8, %s16
          %p234 = scmp.lt.s32.totalorder %s233, 15
          %s235 = scalar_select %p234, %s233, 15
          %s236 = smul.addr %s235, 8
          %s237 = scalar_lea.vmem %s1, %s236
          %s238 = smul.u32 8, %s16
        $region36: #{tpu_custom_call.1} parent=27 // pred_fallthru
          _
        // Predicated region
        $region37: #{tpu_custom_call.1} parent=27 // pred_check
          %p239 = pneg %p88
        $region38: #{tpu_custom_call.1} parent=27 // pred_check_branch
          %241 = sbr.rel (%p239) target = $region40
        $region39: #{tpu_custom_call.1} parent=27 // pred_region
          %p242 = scmp.lt.s32.totalorder %s16, 1
          %s243 = scalar_select %p242, %s16, 1
          %s244 = smul.addr %s243, 8
          %s245 = scalar_lea.vmem %s2, %s244
        $region40: #{tpu_custom_call.1} parent=27 // pred_fallthru
          _
      $region28: #{tpu_custom_call.1} parent=5 // pred_fallthru
        _
      %p246 = scmp.le.s32.totalorder 1, %s16
      %p247 = scmp.lt.s32.totalorder %s16, 3
      %p248 = pnand %p246, %p247
      %p249 = pneg %p248
      // Predicated region
      $region41: #{tpu_custom_call.1} parent=5 // pred_check
        _
      $region42: #{tpu_custom_call.1} parent=5 // pred_check_branch
        %251 = sbr.rel (%p248) target = $region44
      $region43: #{tpu_custom_call.1} parent=5 // pred_region
        %s252 = ssub.s32 %s16, 1
        // Predicated region
        $region45: #{tpu_custom_call.1} parent=43 // pred_check
          %p253 = pneg %p136
        $region46: #{tpu_custom_call.1} parent=43 // pred_check_branch
          %255 = sbr.rel (%p253) target = $region48
        $region47: #{tpu_custom_call.1} parent=43 // pred_region
          %256 = dma.done [#allocation3], 1024
        $region48: #{tpu_custom_call.1} parent=43 // pred_fallthru
          _
        %s257 = smul.u32 8, %s21
        %p258 = scmp.lt.s32.totalorder %s257, 15
        %s259 = scalar_select %p258, %s257, 15
        %s260 = smul.addr %s259, 8
        %s261 = scalar_lea.vmem %s0, %s260
        %p262 = pneg %p42
        %p263 = pneg %p39
        %s264 = smul.u32 8, %s21
        %p265 = scmp.lt.s32.totalorder %s264, 15
        %s266 = scalar_select %p265, %s264, 15
        %s267 = smul.addr %s266, 8
        %s268 = scalar_lea.vmem %s1, %s267
        %p269 = pneg %p68
        %p270 = pneg %p65
        %p271 = scmp.lt.s32.totalorder %s21, 1
        %s272 = scalar_select %p271, %s21, 1
        %s273 = smul.addr %s272, 8
        %s274 = scalar_lea.vmem %s2, %s273
        %p275 = pneg %p94
        %p276 = pneg %p91
        %p277 = pneg %p115
        %p278 = pneg %p112
        %p279 = pneg %p136
        %p280 = pneg %p133
        %p281 = pneg %p157
        %p282 = pneg %p154
        %p283 = pneg %p183
        %p284 = pneg %p180
        %s285 = sand.u32 %s170, 1
        %s286 = scalar_lea.sflag [#allocation4], %s285
        %s287 = sand.u32 %s170, 1
        %s288 = smul.addr %s287, 8
        %s289 = scalar_lea.vmem [#allocation5], %s288
        %s290 = smul.u32 8, %s21
        %p291 = scmp.lt.s32.totalorder %s290, 15
        %s292 = scalar_select %p291, %s290, 15
        %s293 = smul.addr %s292, 8
        %s294 = scalar_lea.vmem %s0, %s293
        %s295 = smul.u32 8, %s21
        %s296 = smul.u32 8, %s21
        %p297 = scmp.lt.s32.totalorder %s296, 15
        %s298 = scalar_select %p297, %s296, 15
        %s299 = smul.addr %s298, 8
        %s300 = scalar_lea.vmem %s1, %s299
        %s301 = smul.u32 8, %s21
        %p302 = scmp.lt.s32.totalorder %s21, 1
        %s303 = scalar_select %p302, %s21, 1
        %s304 = smul.addr %s303, 8
        %s305 = scalar_lea.vmem %s2, %s304
        %v306 = vld [vmem:[%s294] sm:$0xff]
        %v307 = vld [vmem:[%s294 + $0x8] sm:$0xff]
        %v308 = vld [vmem:[%s294 + $0x10] sm:$0xff]
        %v309 = vld [vmem:[%s294 + $0x18] sm:$0xff]
        %v310 = vld [vmem:[%s294 + $0x20] sm:$0xff]
        %v311 = vld [vmem:[%s294 + $0x28] sm:$0xff]
        %v312 = vld [vmem:[%s294 + $0x30] sm:$0xff]
        %v313 = vld [vmem:[%s294 + $0x38] sm:$0xff]
        %v314 = vld [vmem:[%s300] sm:$0x1f]
        %v315 = vld [vmem:[%s300 + $0x8] sm:$0x1f]
        %v316 = vld [vmem:[%s300 + $0x10] sm:$0x1f]
        %v317 = vld [vmem:[%s300 + $0x18] sm:$0x1f]
        %v318 = vld [vmem:[%s300 + $0x20] sm:$0x1f]
        %v319 = vld [vmem:[%s300 + $0x28] sm:$0x1f]
        %v320 = vld [vmem:[%s300 + $0x30] sm:$0x1f]
        %v321 = vld [vmem:[%s300 + $0x38] sm:$0x1f]
        %v322 = vld [vmem:[%s305] sm:$0xff]
        %vm323 = vcmask 523264
        %v325 = vsel %vm323, %v306, 0
        %v328 = vsel %vm323, %v314, 0
        %330 = vmatprep.subr.mxu0 0.0
        %331 = vmatpush1.xpose.msra.mxu0 %v328
        %332 = vmatprep.subr.mxu0 0.0
        %333 = vmatpush1.xpose.msra.mxu0 0.0
        %334 = vmatprep.subr.mxu0 0.0
        %335 = vmatpush1.xpose.msra.mxu0 0.0
        %336 = vmatprep.subr.mxu0 0.0
        %337 = vmatpush1.xpose.msra.mxu0 0.0
        %338 = vmatprep.subr.mxu0 0.0
        %339 = vmatpush1.xpose.msra.mxu0 0.0
        %340 = vmatprep.subr.mxu0 0.0
        %341 = vmatpush1.xpose.msra.mxu0 0.0
        %342 = vmatprep.subr.mxu0 0.0
        %343 = vmatpush1.xpose.msra.mxu0 0.0
        %344 = vmatprep.subr.mxu0 0.0
        %345 = vmatpush1.xpose.msra.mxu0 0.0
        %346 = vmatprep.subr.mxu0 0.0
        %347 = vmatpush1.xpose.msra.mxu0 0.0
        %348 = vmatprep.subr.mxu0 0.0
        %349 = vmatpush1.xpose.msra.mxu0 0.0
        %350 = vmatprep.subr.mxu0 0.0
        %351 = vmatpush1.xpose.msra.mxu0 0.0
        %352 = vmatprep.subr.mxu0 0.0
        %353 = vmatpush1.xpose.msra.mxu0 0.0
        %354 = vmatprep.subr.mxu0 0.0
        %355 = vmatpush1.xpose.msra.mxu0 0.0
        %356 = vmatprep.subr.mxu0 0.0
        %357 = vmatpush1.xpose.msra.mxu0 0.0
        %358 = vmatprep.subr.mxu0 0.0
        %359 = vmatpush1.xpose.msra.mxu0 0.0
        %360 = vmatprep.subr.mxu0 0.0
        %361 = vmatpush1.xpose.msra.mxu0 0.0
        %362 = vmatprep.subr.mxu0 0.0
        %363 = vmatpush1.xpose.msra.mxu0 0.0
        %364 = vmatprep.subr.mxu0 0.0
        %365 = vmatpush1.xpose.msra.mxu0 0.0
        %366 = vmatprep.subr.mxu0 0.0
        %367 = vmatpush1.xpose.msra.mxu0 0.0
        %368 = vmatprep.subr.mxu0 0.0
        %369 = vmatpush1.xpose.msra.mxu0 0.0
        %370 = vmatprep.subr.mxu0 0.0
        %371 = vmatpush1.xpose.msra.mxu0 0.0
        %372 = vmatprep.subr.mxu0 0.0
        %373 = vmatpush1.xpose.msra.mxu0 0.0
        %374 = vmatprep.subr.mxu0 0.0
        %375 = vmatpush1.xpose.msra.mxu0 0.0
        %376 = vmatprep.subr.mxu0 0.0
        %377 = vmatpush1.xpose.msra.mxu0 0.0
        %378 = vmatprep.subr.mxu0 0.0
        %379 = vmatpush1.xpose.msra.mxu0 0.0
        %380 = vmatprep.subr.mxu0 0.0
        %381 = vmatpush1.xpose.msra.mxu0 0.0
        %382 = vmatprep.subr.mxu0 0.0
        %383 = vmatpush1.xpose.msra.mxu0 0.0
        %384 = vmatprep.subr.mxu0 0.0
        %385 = vmatpush1.xpose.msra.mxu0 0.0
        %386 = vmatprep.subr.mxu0 0.0
        %387 = vmatpush1.xpose.msra.mxu0 0.0
        %388 = vmatprep.subr.mxu0 0.0
        %389 = vmatpush1.xpose.msra.mxu0 0.0
        %390 = vmatprep.subr.mxu0 0.0
        %391 = vmatpush1.xpose.msra.mxu0 0.0
        %392 = vmatprep.subr.mxu0 0.0
        %393 = vmatpush1.xpose.msra.mxu0 0.0
        %394 = vmatprep.mubr.f32.mxu0 0.0
        %395 = vmatmul.mubr.f32.gmra.mrb[0].mxu0 %v325
        %v396 = vpop.f32.mrb[0].mxu0
        %v397 = vadd.f32 0.0, %v396
        %v398 = vpop.f32.mrb[0].mxu0
        %399 = vdwg.mxu0
        %v401 = vsel %vm323, %v307, 0
        %v404 = vsel %vm323, %v315, 0
        %406 = vmatprep.subr.mxu0 0.0
        %407 = vmatpush1.xpose.msra.mxu0 %v404
        %408 = vmatprep.subr.mxu0 0.0
        %409 = vmatpush1.xpose.msra.mxu0 0.0
        %410 = vmatprep.subr.mxu0 0.0
        %411 = vmatpush1.xpose.msra.mxu0 0.0
        %412 = vmatprep.subr.mxu0 0.0
        %413 = vmatpush1.xpose.msra.mxu0 0.0
        %414 = vmatprep.subr.mxu0 0.0
        %415 = vmatpush1.xpose.msra.mxu0 0.0
        %416 = vmatprep.subr.mxu0 0.0
        %417 = vmatpush1.xpose.msra.mxu0 0.0
        %418 = vmatprep.subr.mxu0 0.0
        %419 = vmatpush1.xpose.msra.mxu0 0.0
        %420 = vmatprep.subr.mxu0 0.0
        %421 = vmatpush1.xpose.msra.mxu0 0.0
        %422 = vmatprep.subr.mxu0 0.0
        %423 = vmatpush1.xpose.msra.mxu0 0.0
        %424 = vmatprep.subr.mxu0 0.0
        %425 = vmatpush1.xpose.msra.mxu0 0.0
        %426 = vmatprep.subr.mxu0 0.0
        %427 = vmatpush1.xpose.msra.mxu0 0.0
        %428 = vmatprep.subr.mxu0 0.0
        %429 = vmatpush1.xpose.msra.mxu0 0.0
        %430 = vmatprep.subr.mxu0 0.0
        %431 = vmatpush1.xpose.msra.mxu0 0.0
        %432 = vmatprep.subr.mxu0 0.0
        %433 = vmatpush1.xpose.msra.mxu0 0.0
        %434 = vmatprep.subr.mxu0 0.0
        %435 = vmatpush1.xpose.msra.mxu0 0.0
        %436 = vmatprep.subr.mxu0 0.0
        %437 = vmatpush1.xpose.msra.mxu0 0.0
        %438 = vmatprep.subr.mxu0 0.0
        %439 = vmatpush1.xpose.msra.mxu0 0.0
        %440 = vmatprep.subr.mxu0 0.0
        %441 = vmatpush1.xpose.msra.mxu0 0.0
        %442 = vmatprep.subr.mxu0 0.0
        %443 = vmatpush1.xpose.msra.mxu0 0.0
        %444 = vmatprep.subr.mxu0 0.0
        %445 = vmatpush1.xpose.msra.mxu0 0.0
        %446 = vmatprep.subr.mxu0 0.0
        %447 = vmatpush1.xpose.msra.mxu0 0.0
        %448 = vmatprep.subr.mxu0 0.0
        %449 = vmatpush1.xpose.msra.mxu0 0.0
        %450 = vmatprep.subr.mxu0 0.0
        %451 = vmatpush1.xpose.msra.mxu0 0.0
        %452 = vmatprep.subr.mxu0 0.0
        %453 = vmatpush1.xpose.msra.mxu0 0.0
        %454 = vmatprep.subr.mxu0 0.0
        %455 = vmatpush1.xpose.msra.mxu0 0.0
        %456 = vmatprep.subr.mxu0 0.0
        %457 = vmatpush1.xpose.msra.mxu0 0.0
        %458 = vmatprep.subr.mxu0 0.0
        %459 = vmatpush1.xpose.msra.mxu0 0.0
        %460 = vmatprep.subr.mxu0 0.0
        %461 = vmatpush1.xpose.msra.mxu0 0.0
        %462 = vmatprep.subr.mxu0 0.0
        %463 = vmatpush1.xpose.msra.mxu0 0.0
        %464 = vmatprep.subr.mxu0 0.0
        %465 = vmatpush1.xpose.msra.mxu0 0.0
        %466 = vmatprep.subr.mxu0 0.0
        %467 = vmatpush1.xpose.msra.mxu0 0.0
        %468 = vmatprep.subr.mxu0 0.0
        %469 = vmatpush1.xpose.msra.mxu0 0.0
        %470 = vmatprep.mubr.f32.mxu0 0.0
        %471 = vmatmul.mubr.f32.gmra.mrb[0].mxu0 %v401
        %v472 = vpop.f32.mrb[0].mxu0
        %v473 = vadd.f32 0.0, %v472
        %v474 = vpop.f32.mrb[0].mxu0
        %475 = vdwg.mxu0
        %v477 = vsel %vm323, %v308, 0
        %v480 = vsel %vm323, %v316, 0
        %482 = vmatprep.subr.mxu0 0.0
        %483 = vmatpush1.xpose.msra.mxu0 %v480
        %484 = vmatprep.subr.mxu0 0.0
        %485 = vmatpush1.xpose.msra.mxu0 0.0
        %486 = vmatprep.subr.mxu0 0.0
        %487 = vmatpush1.xpose.msra.mxu0 0.0
        %488 = vmatprep.subr.mxu0 0.0
        %489 = vmatpush1.xpose.msra.mxu0 0.0
        %490 = vmatprep.subr.mxu0 0.0
        %491 = vmatpush1.xpose.msra.mxu0 0.0
        %492 = vmatprep.subr.mxu0 0.0
        %493 = vmatpush1.xpose.msra.mxu0 0.0
        %494 = vmatprep.subr.mxu0 0.0
        %495 = vmatpush1.xpose.msra.mxu0 0.0
        %496 = vmatprep.subr.mxu0 0.0
        %497 = vmatpush1.xpose.msra.mxu0 0.0
        %498 = vmatprep.subr.mxu0 0.0
        %499 = vmatpush1.xpose.msra.mxu0 0.0
        %500 = vmatprep.subr.mxu0 0.0
        %501 = vmatpush1.xpose.msra.mxu0 0.0
        %502 = vmatprep.subr.mxu0 0.0
        %503 = vmatpush1.xpose.msra.mxu0 0.0
        %504 = vmatprep.subr.mxu0 0.0
        %505 = vmatpush1.xpose.msra.mxu0 0.0
        %506 = vmatprep.subr.mxu0 0.0
        %507 = vmatpush1.xpose.msra.mxu0 0.0
        %508 = vmatprep.subr.mxu0 0.0
        %509 = vmatpush1.xpose.msra.mxu0 0.0
        %510 = vmatprep.subr.mxu0 0.0
        %511 = vmatpush1.xpose.msra.mxu0 0.0
        %512 = vmatprep.subr.mxu0 0.0
        %513 = vmatpush1.xpose.msra.mxu0 0.0
        %514 = vmatprep.subr.mxu0 0.0
        %515 = vmatpush1.xpose.msra.mxu0 0.0
        %516 = vmatprep.subr.mxu0 0.0
        %517 = vmatpush1.xpose.msra.mxu0 0.0
        %518 = vmatprep.subr.mxu0 0.0
        %519 = vmatpush1.xpose.msra.mxu0 0.0
        %520 = vmatprep.subr.mxu0 0.0
        %521 = vmatpush1.xpose.msra.mxu0 0.0
        %522 = vmatprep.subr.mxu0 0.0
        %523 = vmatpush1.xpose.msra.mxu0 0.0
        %524 = vmatprep.subr.mxu0 0.0
        %525 = vmatpush1.xpose.msra.mxu0 0.0
        %526 = vmatprep.subr.mxu0 0.0
        %527 = vmatpush1.xpose.msra.mxu0 0.0
        %528 = vmatprep.subr.mxu0 0.0
        %529 = vmatpush1.xpose.msra.mxu0 0.0
        %530 = vmatprep.subr.mxu0 0.0
        %531 = vmatpush1.xpose.msra.mxu0 0.0
        %532 = vmatprep.subr.mxu0 0.0
        %533 = vmatpush1.xpose.msra.mxu0 0.0
        %534 = vmatprep.subr.mxu0 0.0
        %535 = vmatpush1.xpose.msra.mxu0 0.0
        %536 = vmatprep.subr.mxu0 0.0
        %537 = vmatpush1.xpose.msra.mxu0 0.0
        %538 = vmatprep.subr.mxu0 0.0
        %539 = vmatpush1.xpose.msra.mxu0 0.0
        %540 = vmatprep.subr.mxu0 0.0
        %541 = vmatpush1.xpose.msra.mxu0 0.0
        %542 = vmatprep.subr.mxu0 0.0
        %543 = vmatpush1.xpose.msra.mxu0 0.0
        %544 = vmatprep.subr.mxu0 0.0
        %545 = vmatpush1.xpose.msra.mxu0 0.0
        %546 = vmatprep.mubr.f32.mxu0 0.0
        %547 = vmatmul.mubr.f32.gmra.mrb[0].mxu0 %v477
        %v548 = vpop.f32.mrb[0].mxu0
        %v549 = vadd.f32 0.0, %v548
        %v550 = vpop.f32.mrb[0].mxu0
        %551 = vdwg.mxu0
        %v553 = vsel %vm323, %v309, 0
        %v556 = vsel %vm323, %v317, 0
        %558 = vmatprep.subr.mxu0 0.0
        %559 = vmatpush1.xpose.msra.mxu0 %v556
        %560 = vmatprep.subr.mxu0 0.0
        %561 = vmatpush1.xpose.msra.mxu0 0.0
        %562 = vmatprep.subr.mxu0 0.0
        %563 = vmatpush1.xpose.msra.mxu0 0.0
        %564 = vmatprep.subr.mxu0 0.0
        %565 = vmatpush1.xpose.msra.mxu0 0.0
        %566 = vmatprep.subr.mxu0 0.0
        %567 = vmatpush1.xpose.msra.mxu0 0.0
        %568 = vmatprep.subr.mxu0 0.0
        %569 = vmatpush1.xpose.msra.mxu0 0.0
        %570 = vmatprep.subr.mxu0 0.0
        %571 = vmatpush1.xpose.msra.mxu0 0.0
        %572 = vmatprep.subr.mxu0 0.0
        %573 = vmatpush1.xpose.msra.mxu0 0.0
        %574 = vmatprep.subr.mxu0 0.0
        %575 = vmatpush1.xpose.msra.mxu0 0.0
        %576 = vmatprep.subr.mxu0 0.0
        %577 = vmatpush1.xpose.msra.mxu0 0.0
        %578 = vmatprep.subr.mxu0 0.0
        %579 = vmatpush1.xpose.msra.mxu0 0.0
        %580 = vmatprep.subr.mxu0 0.0
        %581 = vmatpush1.xpose.msra.mxu0 0.0
        %582 = vmatprep.subr.mxu0 0.0
        %583 = vmatpush1.xpose.msra.mxu0 0.0
        %584 = vmatprep.subr.mxu0 0.0
        %585 = vmatpush1.xpose.msra.mxu0 0.0
        %586 = vmatprep.subr.mxu0 0.0
        %587 = vmatpush1.xpose.msra.mxu0 0.0
        %588 = vmatprep.subr.mxu0 0.0
        %589 = vmatpush1.xpose.msra.mxu0 0.0
        %590 = vmatprep.subr.mxu0 0.0
        %591 = vmatpush1.xpose.msra.mxu0 0.0
        %592 = vmatprep.subr.mxu0 0.0
        %593 = vmatpush1.xpose.msra.mxu0 0.0
        %594 = vmatprep.subr.mxu0 0.0
        %595 = vmatpush1.xpose.msra.mxu0 0.0
        %596 = vmatprep.subr.mxu0 0.0
        %597 = vmatpush1.xpose.msra.mxu0 0.0
        %598 = vmatprep.subr.mxu0 0.0
        %599 = vmatpush1.xpose.msra.mxu0 0.0
        %600 = vmatprep.subr.mxu0 0.0
        %601 = vmatpush1.xpose.msra.mxu0 0.0
        %602 = vmatprep.subr.mxu0 0.0
        %603 = vmatpush1.xpose.msra.mxu0 0.0
        %604 = vmatprep.subr.mxu0 0.0
        %605 = vmatpush1.xpose.msra.mxu0 0.0
        %606 = vmatprep.subr.mxu0 0.0
        %607 = vmatpush1.xpose.msra.mxu0 0.0
        %608 = vmatprep.subr.mxu0 0.0
        %609 = vmatpush1.xpose.msra.mxu0 0.0
        %610 = vmatprep.subr.mxu0 0.0
        %611 = vmatpush1.xpose.msra.mxu0 0.0
        %612 = vmatprep.subr.mxu0 0.0
        %613 = vmatpush1.xpose.msra.mxu0 0.0
        %614 = vmatprep.subr.mxu0 0.0
        %615 = vmatpush1.xpose.msra.mxu0 0.0
        %616 = vmatprep.subr.mxu0 0.0
        %617 = vmatpush1.xpose.msra.mxu0 0.0
        %618 = vmatprep.subr.mxu0 0.0
        %619 = vmatpush1.xpose.msra.mxu0 0.0
        %620 = vmatprep.subr.mxu0 0.0
        %621 = vmatpush1.xpose.msra.mxu0 0.0
        %622 = vmatprep.mubr.f32.mxu0 0.0
        %623 = vmatmul.mubr.f32.gmra.mrb[0].mxu0 %v553
        %v624 = vpop.f32.mrb[0].mxu0
        %v625 = vadd.f32 0.0, %v624
        %v626 = vpop.f32.mrb[0].mxu0
        %627 = vdwg.mxu0
        %v629 = vsel %vm323, %v310, 0
        %v632 = vsel %vm323, %v318, 0
        %634 = vmatprep.subr.mxu0 0.0
        %635 = vmatpush1.xpose.msra.mxu0 %v632
        %636 = vmatprep.subr.mxu0 0.0
        %637 = vmatpush1.xpose.msra.mxu0 0.0
        %638 = vmatprep.subr.mxu0 0.0
        %639 = vmatpush1.xpose.msra.mxu0 0.0
        %640 = vmatprep.subr.mxu0 0.0
        %641 = vmatpush1.xpose.msra.mxu0 0.0
        %642 = vmatprep.subr.mxu0 0.0
        %643 = vmatpush1.xpose.msra.mxu0 0.0
        %644 = vmatprep.subr.mxu0 0.0
        %645 = vmatpush1.xpose.msra.mxu0 0.0
        %646 = vmatprep.subr.mxu0 0.0
        %647 = vmatpush1.xpose.msra.mxu0 0.0
        %648 = vmatprep.subr.mxu0 0.0
        %649 = vmatpush1.xpose.msra.mxu0 0.0
        %650 = vmatprep.subr.mxu0 0.0
        %651 = vmatpush1.xpose.msra.mxu0 0.0
        %652 = vmatprep.subr.mxu0 0.0
        %653 = vmatpush1.xpose.msra.mxu0 0.0
        %654 = vmatprep.subr.mxu0 0.0
        %655 = vmatpush1.xpose.msra.mxu0 0.0
        %656 = vmatprep.subr.mxu0 0.0
        %657 = vmatpush1.xpose.msra.mxu0 0.0
        %658 = vmatprep.subr.mxu0 0.0
        %659 = vmatpush1.xpose.msra.mxu0 0.0
        %660 = vmatprep.subr.mxu0 0.0
        %661 = vmatpush1.xpose.msra.mxu0 0.0
        %662 = vmatprep.subr.mxu0 0.0
        %663 = vmatpush1.xpose.msra.mxu0 0.0
        %664 = vmatprep.subr.mxu0 0.0
        %665 = vmatpush1.xpose.msra.mxu0 0.0
        %666 = vmatprep.subr.mxu0 0.0
        %667 = vmatpush1.xpose.msra.mxu0 0.0
        %668 = vmatprep.subr.mxu0 0.0
        %669 = vmatpush1.xpose.msra.mxu0 0.0
        %670 = vmatprep.subr.mxu0 0.0
        %671 = vmatpush1.xpose.msra.mxu0 0.0
        %672 = vmatprep.subr.mxu0 0.0
        %673 = vmatpush1.xpose.msra.mxu0 0.0
        %674 = vmatprep.subr.mxu0 0.0
        %675 = vmatpush1.xpose.msra.mxu0 0.0
        %676 = vmatprep.subr.mxu0 0.0
        %677 = vmatpush1.xpose.msra.mxu0 0.0
        %678 = vmatprep.subr.mxu0 0.0
        %679 = vmatpush1.xpose.msra.mxu0 0.0
        %680 = vmatprep.subr.mxu0 0.0
        %681 = vmatpush1.xpose.msra.mxu0 0.0
        %682 = vmatprep.subr.mxu0 0.0
        %683 = vmatpush1.xpose.msra.mxu0 0.0
        %684 = vmatprep.subr.mxu0 0.0
        %685 = vmatpush1.xpose.msra.mxu0 0.0
        %686 = vmatprep.subr.mxu0 0.0
        %687 = vmatpush1.xpose.msra.mxu0 0.0
        %688 = vmatprep.subr.mxu0 0.0
        %689 = vmatpush1.xpose.msra.mxu0 0.0
        %690 = vmatprep.subr.mxu0 0.0
        %691 = vmatpush1.xpose.msra.mxu0 0.0
        %692 = vmatprep.subr.mxu0 0.0
        %693 = vmatpush1.xpose.msra.mxu0 0.0
        %694 = vmatprep.subr.mxu0 0.0
        %695 = vmatpush1.xpose.msra.mxu0 0.0
        %696 = vmatprep.subr.mxu0 0.0
        %697 = vmatpush1.xpose.msra.mxu0 0.0
        %698 = vmatprep.mubr.f32.mxu0 0.0
        %699 = vmatmul.mubr.f32.gmra.mrb[0].mxu0 %v629
        %v700 = vpop.f32.mrb[0].mxu0
        %v701 = vadd.f32 0.0, %v700
        %v702 = vpop.f32.mrb[0].mxu0
        %703 = vdwg.mxu0
        %v705 = vsel %vm323, %v311, 0
        %v708 = vsel %vm323, %v319, 0
        %710 = vmatprep.subr.mxu0 0.0
        %711 = vmatpush1.xpose.msra.mxu0 %v708
        %712 = vmatprep.subr.mxu0 0.0
        %713 = vmatpush1.xpose.msra.mxu0 0.0
        %714 = vmatprep.subr.mxu0 0.0
        %715 = vmatpush1.xpose.msra.mxu0 0.0
        %716 = vmatprep.subr.mxu0 0.0
        %717 = vmatpush1.xpose.msra.mxu0 0.0
        %718 = vmatprep.subr.mxu0 0.0
        %719 = vmatpush1.xpose.msra.mxu0 0.0
        %720 = vmatprep.subr.mxu0 0.0
        %721 = vmatpush1.xpose.msra.mxu0 0.0
        %722 = vmatprep.subr.mxu0 0.0
        %723 = vmatpush1.xpose.msra.mxu0 0.0
        %724 = vmatprep.subr.mxu0 0.0
        %725 = vmatpush1.xpose.msra.mxu0 0.0
        %726 = vmatprep.subr.mxu0 0.0
        %727 = vmatpush1.xpose.msra.mxu0 0.0
        %728 = vmatprep.subr.mxu0 0.0
        %729 = vmatpush1.xpose.msra.mxu0 0.0
        %730 = vmatprep.subr.mxu0 0.0
        %731 = vmatpush1.xpose.msra.mxu0 0.0
        %732 = vmatprep.subr.mxu0 0.0
        %733 = vmatpush1.xpose.msra.mxu0 0.0
        %734 = vmatprep.subr.mxu0 0.0
        %735 = vmatpush1.xpose.msra.mxu0 0.0
        %736 = vmatprep.subr.mxu0 0.0
        %737 = vmatpush1.xpose.msra.mxu0 0.0
        %738 = vmatprep.subr.mxu0 0.0
        %739 = vmatpush1.xpose.msra.mxu0 0.0
        %740 = vmatprep.subr.mxu0 0.0
        %741 = vmatpush1.xpose.msra.mxu0 0.0
        %742 = vmatprep.subr.mxu0 0.0
        %743 = vmatpush1.xpose.msra.mxu0 0.0
        %744 = vmatprep.subr.mxu0 0.0
        %745 = vmatpush1.xpose.msra.mxu0 0.0
        %746 = vmatprep.subr.mxu0 0.0
        %747 = vmatpush1.xpose.msra.mxu0 0.0
        %748 = vmatprep.subr.mxu0 0.0
        %749 = vmatpush1.xpose.msra.mxu0 0.0
        %750 = vmatprep.subr.mxu0 0.0
        %751 = vmatpush1.xpose.msra.mxu0 0.0
        %752 = vmatprep.subr.mxu0 0.0
        %753 = vmatpush1.xpose.msra.mxu0 0.0
        %754 = vmatprep.subr.mxu0 0.0
        %755 = vmatpush1.xpose.msra.mxu0 0.0
        %756 = vmatprep.subr.mxu0 0.0
        %757 = vmatpush1.xpose.msra.mxu0 0.0
        %758 = vmatprep.subr.mxu0 0.0
        %759 = vmatpush1.xpose.msra.mxu0 0.0
        %760 = vmatprep.subr.mxu0 0.0
        %761 = vmatpush1.xpose.msra.mxu0 0.0
        %762 = vmatprep.subr.mxu0 0.0
        %763 = vmatpush1.xpose.msra.mxu0 0.0
        %764 = vmatprep.subr.mxu0 0.0
        %765 = vmatpush1.xpose.msra.mxu0 0.0
        %766 = vmatprep.subr.mxu0 0.0
        %767 = vmatpush1.xpose.msra.mxu0 0.0
        %768 = vmatprep.subr.mxu0 0.0
        %769 = vmatpush1.xpose.msra.mxu0 0.0
        %770 = vmatprep.subr.mxu0 0.0
        %771 = vmatpush1.xpose.msra.mxu0 0.0
        %772 = vmatprep.subr.mxu0 0.0
        %773 = vmatpush1.xpose.msra.mxu0 0.0
        %774 = vmatprep.mubr.f32.mxu0 0.0
        %775 = vmatmul.mubr.f32.gmra.mrb[0].mxu0 %v705
        %v776 = vpop.f32.mrb[0].mxu0
        %v777 = vadd.f32 0.0, %v776
        %v778 = vpop.f32.mrb[0].mxu0
        %779 = vdwg.mxu0
        %v781 = vsel %vm323, %v312, 0
        %v784 = vsel %vm323, %v320, 0
        %786 = vmatprep.subr.mxu0 0.0
        %787 = vmatpush1.xpose.msra.mxu0 %v784
        %788 = vmatprep.subr.mxu0 0.0
        %789 = vmatpush1.xpose.msra.mxu0 0.0
        %790 = vmatprep.subr.mxu0 0.0
        %791 = vmatpush1.xpose.msra.mxu0 0.0
        %792 = vmatprep.subr.mxu0 0.0
        %793 = vmatpush1.xpose.msra.mxu0 0.0
        %794 = vmatprep.subr.mxu0 0.0
        %795 = vmatpush1.xpose.msra.mxu0 0.0
        %796 = vmatprep.subr.mxu0 0.0
        %797 = vmatpush1.xpose.msra.mxu0 0.0
        %798 = vmatprep.subr.mxu0 0.0
        %799 = vmatpush1.xpose.msra.mxu0 0.0
        %800 = vmatprep.subr.mxu0 0.0
        %801 = vmatpush1.xpose.msra.mxu0 0.0
        %802 = vmatprep.subr.mxu0 0.0
        %803 = vmatpush1.xpose.msra.mxu0 0.0
        %804 = vmatprep.subr.mxu0 0.0
        %805 = vmatpush1.xpose.msra.mxu0 0.0
        %806 = vmatprep.subr.mxu0 0.0
        %807 = vmatpush1.xpose.msra.mxu0 0.0
        %808 = vmatprep.subr.mxu0 0.0
        %809 = vmatpush1.xpose.msra.mxu0 0.0
        %810 = vmatprep.subr.mxu0 0.0
        %811 = vmatpush1.xpose.msra.mxu0 0.0
        %812 = vmatprep.subr.mxu0 0.0
        %813 = vmatpush1.xpose.msra.mxu0 0.0
        %814 = vmatprep.subr.mxu0 0.0
        %815 = vmatpush1.xpose.msra.mxu0 0.0
        %816 = vmatprep.subr.mxu0 0.0
        %817 = vmatpush1.xpose.msra.mxu0 0.0
        %818 = vmatprep.subr.mxu0 0.0
        %819 = vmatpush1.xpose.msra.mxu0 0.0
        %820 = vmatprep.subr.mxu0 0.0
        %821 = vmatpush1.xpose.msra.mxu0 0.0
        %822 = vmatprep.subr.mxu0 0.0
        %823 = vmatpush1.xpose.msra.mxu0 0.0
        %824 = vmatprep.subr.mxu0 0.0
        %825 = vmatpush1.xpose.msra.mxu0 0.0
        %826 = vmatprep.subr.mxu0 0.0
        %827 = vmatpush1.xpose.msra.mxu0 0.0
        %828 = vmatprep.subr.mxu0 0.0
        %829 = vmatpush1.xpose.msra.mxu0 0.0
        %830 = vmatprep.subr.mxu0 0.0
        %831 = vmatpush1.xpose.msra.mxu0 0.0
        %832 = vmatprep.subr.mxu0 0.0
        %833 = vmatpush1.xpose.msra.mxu0 0.0
        %834 = vmatprep.subr.mxu0 0.0
        %835 = vmatpush1.xpose.msra.mxu0 0.0
        %836 = vmatprep.subr.mxu0 0.0
        %837 = vmatpush1.xpose.msra.mxu0 0.0
        %838 = vmatprep.subr.mxu0 0.0
        %839 = vmatpush1.xpose.msra.mxu0 0.0
        %840 = vmatprep.subr.mxu0 0.0
        %841 = vmatpush1.xpose.msra.mxu0 0.0
        %842 = vmatprep.subr.mxu0 0.0
        %843 = vmatpush1.xpose.msra.mxu0 0.0
        %844 = vmatprep.subr.mxu0 0.0
        %845 = vmatpush1.xpose.msra.mxu0 0.0
        %846 = vmatprep.subr.mxu0 0.0
        %847 = vmatpush1.xpose.msra.mxu0 0.0
        %848 = vmatprep.subr.mxu0 0.0
        %849 = vmatpush1.xpose.msra.mxu0 0.0
        %850 = vmatprep.mubr.f32.mxu0 0.0
        %851 = vmatmul.mubr.f32.gmra.mrb[0].mxu0 %v781
        %v852 = vpop.f32.mrb[0].mxu0
        %v853 = vadd.f32 0.0, %v852
        %v854 = vpop.f32.mrb[0].mxu0
        %855 = vdwg.mxu0
        %v857 = vsel %vm323, %v313, 0
        %v860 = vsel %vm323, %v321, 0
        %862 = vmatprep.subr.mxu0 0.0
        %863 = vmatpush1.xpose.msra.mxu0 %v860
        %864 = vmatprep.subr.mxu0 0.0
        %865 = vmatpush1.xpose.msra.mxu0 0.0
        %866 = vmatprep.subr.mxu0 0.0
        %867 = vmatpush1.xpose.msra.mxu0 0.0
        %868 = vmatprep.subr.mxu0 0.0
        %869 = vmatpush1.xpose.msra.mxu0 0.0
        %870 = vmatprep.subr.mxu0 0.0
        %871 = vmatpush1.xpose.msra.mxu0 0.0
        %872 = vmatprep.subr.mxu0 0.0
        %873 = vmatpush1.xpose.msra.mxu0 0.0
        %874 = vmatprep.subr.mxu0 0.0
        %875 = vmatpush1.xpose.msra.mxu0 0.0
        %876 = vmatprep.subr.mxu0 0.0
        %877 = vmatpush1.xpose.msra.mxu0 0.0
        %878 = vmatprep.subr.mxu0 0.0
        %879 = vmatpush1.xpose.msra.mxu0 0.0
        %880 = vmatprep.subr.mxu0 0.0
        %881 = vmatpush1.xpose.msra.mxu0 0.0
        %882 = vmatprep.subr.mxu0 0.0
        %883 = vmatpush1.xpose.msra.mxu0 0.0
        %884 = vmatprep.subr.mxu0 0.0
        %885 = vmatpush1.xpose.msra.mxu0 0.0
        %886 = vmatprep.subr.mxu0 0.0
        %887 = vmatpush1.xpose.msra.mxu0 0.0
        %888 = vmatprep.subr.mxu0 0.0
        %889 = vmatpush1.xpose.msra.mxu0 0.0
        %890 = vmatprep.subr.mxu0 0.0
        %891 = vmatpush1.xpose.msra.mxu0 0.0
        %892 = vmatprep.subr.mxu0 0.0
        %893 = vmatpush1.xpose.msra.mxu0 0.0
        %894 = vmatprep.subr.mxu0 0.0
        %895 = vmatpush1.xpose.msra.mxu0 0.0
        %896 = vmatprep.subr.mxu0 0.0
        %897 = vmatpush1.xpose.msra.mxu0 0.0
        %898 = vmatprep.subr.mxu0 0.0
        %899 = vmatpush1.xpose.msra.mxu0 0.0
        %900 = vmatprep.subr.mxu0 0.0
        %901 = vmatpush1.xpose.msra.mxu0 0.0
        %902 = vmatprep.subr.mxu0 0.0
        %903 = vmatpush1.xpose.msra.mxu0 0.0
        %904 = vmatprep.subr.mxu0 0.0
        %905 = vmatpush1.xpose.msra.mxu0 0.0
        %906 = vmatprep.subr.mxu0 0.0
        %907 = vmatpush1.xpose.msra.mxu0 0.0
        %908 = vmatprep.subr.mxu0 0.0
        %909 = vmatpush1.xpose.msra.mxu0 0.0
        %910 = vmatprep.subr.mxu0 0.0
        %911 = vmatpush1.xpose.msra.mxu0 0.0
        %912 = vmatprep.subr.mxu0 0.0
        %913 = vmatpush1.xpose.msra.mxu0 0.0
        %914 = vmatprep.subr.mxu0 0.0
        %915 = vmatpush1.xpose.msra.mxu0 0.0
        %916 = vmatprep.subr.mxu0 0.0
        %917 = vmatpush1.xpose.msra.mxu0 0.0
        %918 = vmatprep.subr.mxu0 0.0
        %919 = vmatpush1.xpose.msra.mxu0 0.0
        %920 = vmatprep.subr.mxu0 0.0
        %921 = vmatpush1.xpose.msra.mxu0 0.0
        %922 = vmatprep.subr.mxu0 0.0
        %923 = vmatpush1.xpose.msra.mxu0 0.0
        %924 = vmatprep.subr.mxu0 0.0
        %925 = vmatpush1.xpose.msra.mxu0 0.0
        %926 = vmatprep.mubr.f32.mxu0 0.0
        %927 = vmatmul.mubr.f32.gmra.mrb[0].mxu0 %v857
        %v928 = vpop.f32.mrb[0].mxu0
        %v929 = vadd.f32 0.0, %v928
        %v930 = vpop.f32.mrb[0].mxu0
        %931 = vdwg.mxu0
        %vm932 = vcmask 39936
        %v933 = vsel %vm932, %v397, -inf
        %934 = vmax.xlane.f32.xlu0 %v933
        %v935 = vpop.xlane.xlu0 %934
        %v936 = vsel %vm932, %v473, -inf
        %937 = vmax.xlane.f32.xlu0 %v936
        %v938 = vpop.xlane.xlu0 %937
        %v939 = vsel %vm932, %v549, -inf
        %940 = vmax.xlane.f32.xlu0 %v939
        %v941 = vpop.xlane.xlu0 %940
        %v942 = vsel %vm932, %v625, -inf
        %943 = vmax.xlane.f32.xlu0 %v942
        %v944 = vpop.xlane.xlu0 %943
        %v945 = vsel %vm932, %v701, -inf
        %946 = vmax.xlane.f32.xlu0 %v945
        %v947 = vpop.xlane.xlu0 %946
        %v948 = vsel %vm932, %v777, -inf
        %949 = vmax.xlane.f32.xlu0 %v948
        %v950 = vpop.xlane.xlu0 %949
        %v951 = vsel %vm932, %v853, -inf
        %952 = vmax.xlane.f32.xlu0 %v951
        %v953 = vpop.xlane.xlu0 %952
        %v954 = vsel %vm932, %v929, -inf
        %955 = vmax.xlane.f32.xlu0 %v954
        %v956 = vpop.xlane.xlu0 %955
        %v957 = vrot.slane %v935, 4
        %v958 = vmax.f32 %v935, %v957
        %v959 = vrot.slane %v958, 2
        %v960 = vmax.f32 %v958, %v959
        %v961 = vrot.slane %v960, 1
        %v962 = vmax.f32 %v960, %v961
        %v963 = vrot.slane %v938, 4
        %v964 = vmax.f32 %v938, %v963
        %v965 = vrot.slane %v964, 2
        %v966 = vmax.f32 %v964, %v965
        %v967 = vrot.slane %v966, 1
        %v968 = vmax.f32 %v966, %v967
        %v969 = vrot.slane %v941, 4
        %v970 = vmax.f32 %v941, %v969
        %v971 = vrot.slane %v970, 2
        %v972 = vmax.f32 %v970, %v971
        %v973 = vrot.slane %v972, 1
        %v974 = vmax.f32 %v972, %v973
        %v975 = vrot.slane %v944, 4
        %v976 = vmax.f32 %v944, %v975
        %v977 = vrot.slane %v976, 2
        %v978 = vmax.f32 %v976, %v977
        %v979 = vrot.slane %v978, 1
        %v980 = vmax.f32 %v978, %v979
        %v981 = vrot.slane %v947, 4
        %v982 = vmax.f32 %v947, %v981
        %v983 = vrot.slane %v982, 2
        %v984 = vmax.f32 %v982, %v983
        %v985 = vrot.slane %v984, 1
        %v986 = vmax.f32 %v984, %v985
        %v987 = vrot.slane %v950, 4
        %v988 = vmax.f32 %v950, %v987
        %v989 = vrot.slane %v988, 2
        %v990 = vmax.f32 %v988, %v989
        %v991 = vrot.slane %v990, 1
        %v992 = vmax.f32 %v990, %v991
        %v993 = vrot.slane %v953, 4
        %v994 = vmax.f32 %v953, %v993
        %v995 = vrot.slane %v994, 2
        %v996 = vmax.f32 %v994, %v995
        %v997 = vrot.slane %v996, 1
        %v998 = vmax.f32 %v996, %v997
        %v999 = vrot.slane %v956, 4
        %v1000 = vmax.f32 %v956, %v999
        %v1001 = vrot.slane %v1000, 2
        %v1002 = vmax.f32 %v1000, %v1001
        %v1003 = vrot.slane %v1002, 1
        %v1004 = vmax.f32 %v1002, %v1003
        %v1005 = vsub.f32 %v397, %v962
        %v1006 = vsub.f32 %v473, %v968
        %v1007 = vsub.f32 %v549, %v974
        %v1008 = vsub.f32 %v625, %v980
        %v1009 = vsub.f32 %v701, %v986
        %v1010 = vsub.f32 %v777, %v992
        %v1011 = vsub.f32 %v853, %v998
        %v1012 = vsub.f32 %v929, %v1004
        %v1013 = vmul.f32 %v1005, 1.442695
        %v1014 = vpow.pop %v1013
        %v1015 = vmul.f32 %v1006, 1.442695
        %v1016 = vpow.pop %v1015
        %v1017 = vmul.f32 %v1007, 1.442695
        %v1018 = vpow.pop %v1017
        %v1019 = vmul.f32 %v1008, 1.442695
        %v1020 = vpow.pop %v1019
        %v1021 = vmul.f32 %v1009, 1.442695
        %v1022 = vpow.pop %v1021
        %v1023 = vmul.f32 %v1010, 1.442695
        %v1024 = vpow.pop %v1023
        %v1025 = vmul.f32 %v1011, 1.442695
        %v1026 = vpow.pop %v1025
        %v1027 = vmul.f32 %v1012, 1.442695
        %v1028 = vpow.pop %v1027
        %v1029 = vsel %vm932, %v1014, 0.0
        %v1030 = vrot.slane %v1029, 4
        %v1031 = vadd.f32 %v1029, %v1030
        %v1032 = vrot.slane %v1031, 2
        %v1033 = vadd.f32 %v1031, %v1032
        %v1034 = vrot.slane %v1033, 1
        %v1035 = vadd.f32 %v1033, %v1034
        %v1036 = vsel %vm932, %v1016, 0.0
        %v1037 = vrot.slane %v1036, 4
        %v1038 = vadd.f32 %v1036, %v1037
        %v1039 = vrot.slane %v1038, 2
        %v1040 = vadd.f32 %v1038, %v1039
        %v1041 = vrot.slane %v1040, 1
        %v1042 = vadd.f32 %v1040, %v1041
        %v1043 = vsel %vm932, %v1018, 0.0
        %v1044 = vrot.slane %v1043, 4
        %v1045 = vadd.f32 %v1043, %v1044
        %v1046 = vrot.slane %v1045, 2
        %v1047 = vadd.f32 %v1045, %v1046
        %v1048 = vrot.slane %v1047, 1
        %v1049 = vadd.f32 %v1047, %v1048
        %v1050 = vsel %vm932, %v1020, 0.0
        %v1051 = vrot.slane %v1050, 4
        %v1052 = vadd.f32 %v1050, %v1051
        %v1053 = vrot.slane %v1052, 2
        %v1054 = vadd.f32 %v1052, %v1053
        %v1055 = vrot.slane %v1054, 1
        %v1056 = vadd.f32 %v1054, %v1055
        %v1057 = vsel %vm932, %v1022, 0.0
        %v1058 = vrot.slane %v1057, 4
        %v1059 = vadd.f32 %v1057, %v1058
        %v1060 = vrot.slane %v1059, 2
        %v1061 = vadd.f32 %v1059, %v1060
        %v1062 = vrot.slane %v1061, 1
        %v1063 = vadd.f32 %v1061, %v1062
        %v1064 = vsel %vm932, %v1024, 0.0
        %v1065 = vrot.slane %v1064, 4
        %v1066 = vadd.f32 %v1064, %v1065
        %v1067 = vrot.slane %v1066, 2
        %v1068 = vadd.f32 %v1066, %v1067
        %v1069 = vrot.slane %v1068, 1
        %v1070 = vadd.f32 %v1068, %v1069
        %v1071 = vsel %vm932, %v1026, 0.0
        %v1072 = vrot.slane %v1071, 4
        %v1073 = vadd.f32 %v1071, %v1072
        %v1074 = vrot.slane %v1073, 2
        %v1075 = vadd.f32 %v1073, %v1074
        %v1076 = vrot.slane %v1075, 1
        %v1077 = vadd.f32 %v1075, %v1076
        %v1078 = vsel %vm932, %v1028, 0.0
        %v1079 = vrot.slane %v1078, 4
        %v1080 = vadd.f32 %v1078, %v1079
        %v1081 = vrot.slane %v1080, 2
        %v1082 = vadd.f32 %v1080, %v1081
        %v1083 = vrot.slane %v1082, 1
        %v1084 = vadd.f32 %v1082, %v1083
        %1085 = vadd.xlane.f32.xlu0 %v1029
        %v1086 = vpop.xlane.xlu0 %1085
        %1087 = vadd.xlane.f32.xlu0 %v1036
        %v1088 = vpop.xlane.xlu0 %1087
        %1089 = vadd.xlane.f32.xlu0 %v1043
        %v1090 = vpop.xlane.xlu0 %1089
        %1091 = vadd.xlane.f32.xlu0 %v1050
        %v1092 = vpop.xlane.xlu0 %1091
        %1093 = vadd.xlane.f32.xlu0 %v1057
        %v1094 = vpop.xlane.xlu0 %1093
        %1095 = vadd.xlane.f32.xlu0 %v1064
        %v1096 = vpop.xlane.xlu0 %1095
        %1097 = vadd.xlane.f32.xlu0 %v1071
        %v1098 = vpop.xlane.xlu0 %1097
        %1099 = vadd.xlane.f32.xlu0 %v1078
        %v1100 = vpop.xlane.xlu0 %1099
        %v1101 = vrcp.pop %v1035
        %v1102 = vmul.f32 1.0, %v1101
        %v1103 = vrcp.pop %v1042
        %v1104 = vmul.f32 1.0, %v1103
        %v1105 = vrcp.pop %v1049
        %v1106 = vmul.f32 1.0, %v1105
        %v1107 = vrcp.pop %v1056
        %v1108 = vmul.f32 1.0, %v1107
        %v1109 = vrcp.pop %v1063
        %v1110 = vmul.f32 1.0, %v1109
        %v1111 = vrcp.pop %v1070
        %v1112 = vmul.f32 1.0, %v1111
        %v1113 = vrcp.pop %v1077
        %v1114 = vmul.f32 1.0, %v1113
        %v1115 = vrcp.pop %v1084
        %v1116 = vmul.f32 1.0, %v1115
        %v1117 = vrcp.pop %v1086
        %v1118 = vmul.f32 1.0, %v1117
        %v1119 = vrcp.pop %v1088
        %v1120 = vmul.f32 1.0, %v1119
        %v1121 = vrcp.pop %v1090
        %v1122 = vmul.f32 1.0, %v1121
        %v1123 = vrcp.pop %v1092
        %v1124 = vmul.f32 1.0, %v1123
        %v1125 = vrcp.pop %v1094
        %v1126 = vmul.f32 1.0, %v1125
        %v1127 = vrcp.pop %v1096
        %v1128 = vmul.f32 1.0, %v1127
        %v1129 = vrcp.pop %v1098
        %v1130 = vmul.f32 1.0, %v1129
        %v1131 = vrcp.pop %v1100
        %v1132 = vmul.f32 1.0, %v1131
        %v1133 = vmul.f32 %v1014, %v1118
        %v1134 = vmul.f32 %v1016, %v1120
        %v1135 = vmul.f32 %v1018, %v1122
        %v1136 = vmul.f32 %v1020, %v1124
        %v1137 = vmul.f32 %v1022, %v1126
        %v1138 = vmul.f32 %v1024, %v1128
        %v1139 = vmul.f32 %v1026, %v1130
        %v1140 = vmul.f32 %v1028, %v1132
        %v1141 = vsel %vm932, %v1133, 0.0
        %v1142 = vrot.slane %v1141, 4
        %v1143 = vadd.f32 %v1141, %v1142
        %v1144 = vrot.slane %v1143, 2
        %v1145 = vadd.f32 %v1143, %v1144
        %v1146 = vrot.slane %v1145, 1
        %v1147 = vadd.f32 %v1145, %v1146
        %v1148 = vsel %vm932, %v1134, 0.0
        %v1149 = vrot.slane %v1148, 4
        %v1150 = vadd.f32 %v1148, %v1149
        %v1151 = vrot.slane %v1150, 2
        %v1152 = vadd.f32 %v1150, %v1151
        %v1153 = vrot.slane %v1152, 1
        %v1154 = vadd.f32 %v1152, %v1153
        %v1155 = vsel %vm932, %v1135, 0.0
        %v1156 = vrot.slane %v1155, 4
        %v1157 = vadd.f32 %v1155, %v1156
        %v1158 = vrot.slane %v1157, 2
        %v1159 = vadd.f32 %v1157, %v1158
        %v1160 = vrot.slane %v1159, 1
        %v1161 = vadd.f32 %v1159, %v1160
        %v1162 = vsel %vm932, %v1136, 0.0
        %v1163 = vrot.slane %v1162, 4
        %v1164 = vadd.f32 %v1162, %v1163
        %v1165 = vrot.slane %v1164, 2
        %v1166 = vadd.f32 %v1164, %v1165
        %v1167 = vrot.slane %v1166, 1
        %v1168 = vadd.f32 %v1166, %v1167
        %v1169 = vsel %vm932, %v1137, 0.0
        %v1170 = vrot.slane %v1169, 4
        %v1171 = vadd.f32 %v1169, %v1170
        %v1172 = vrot.slane %v1171, 2
        %v1173 = vadd.f32 %v1171, %v1172
        %v1174 = vrot.slane %v1173, 1
        %v1175 = vadd.f32 %v1173, %v1174
        %v1176 = vsel %vm932, %v1138, 0.0
        %v1177 = vrot.slane %v1176, 4
        %v1178 = vadd.f32 %v1176, %v1177
        %v1179 = vrot.slane %v1178, 2
        %v1180 = vadd.f32 %v1178, %v1179
        %v1181 = vrot.slane %v1180, 1
        %v1182 = vadd.f32 %v1180, %v1181
        %v1183 = vsel %vm932, %v1139, 0.0
        %v1184 = vrot.slane %v1183, 4
        %v1185 = vadd.f32 %v1183, %v1184
        %v1186 = vrot.slane %v1185, 2
        %v1187 = vadd.f32 %v1185, %v1186
        %v1188 = vrot.slane %v1187, 1
        %v1189 = vadd.f32 %v1187, %v1188
        %v1190 = vsel %vm932, %v1140, 0.0
        %v1191 = vrot.slane %v1190, 4
        %v1192 = vadd.f32 %v1190, %v1191
        %v1193 = vrot.slane %v1192, 2
        %v1194 = vadd.f32 %v1192, %v1193
        %v1195 = vrot.slane %v1194, 1
        %v1196 = vadd.f32 %v1194, %v1195
        %v1197 = vrcp.pop 8.0
        %v1198 = vmul.f32 %v1147, %v1197
        %v1199 = vmul.f32 %v1154, %v1197
        %v1200 = vmul.f32 %v1161, %v1197
        %v1201 = vmul.f32 %v1168, %v1197
        %v1202 = vmul.f32 %v1175, %v1197
        %v1203 = vmul.f32 %v1182, %v1197
        %v1204 = vmul.f32 %v1189, %v1197
        %v1205 = vmul.f32 %v1196, %v1197
        %v1206 = vmul.f32 %v1198, %v1102
        %v1207 = vmul.f32 %v1199, %v1104
        %v1208 = vmul.f32 %v1200, %v1106
        %v1209 = vmul.f32 %v1201, %v1108
        %v1210 = vmul.f32 %v1202, %v1110
        %v1211 = vmul.f32 %v1203, %v1112
        %v1212 = vmul.f32 %v1204, %v1114
        %v1213 = vmul.f32 %v1205, %v1116
        %v1214 = vmul.f32 %v1014, %v1206
        %v1215 = vmul.f32 %v1016, %v1207
        %v1216 = vmul.f32 %v1018, %v1208
        %v1217 = vmul.f32 %v1020, %v1209
        %v1218 = vmul.f32 %v1022, %v1210
        %v1219 = vmul.f32 %v1024, %v1211
        %v1220 = vmul.f32 %v1026, %v1212
        %v1221 = vmul.f32 %v1028, %v1213
        %v1222 = vsel %vm932, %v1214, 0.0
        %1223 = vadd.xlane.f32.xlu0 %v1222
        %v1224 = vpop.xlane.xlu0 %1223
        %v1225 = vsel %vm932, %v1215, 0.0
        %1226 = vadd.xlane.f32.xlu0 %v1225
        %v1227 = vpop.xlane.xlu0 %1226
        %v1228 = vsel %vm932, %v1216, 0.0
        %1229 = vadd.xlane.f32.xlu0 %v1228
        %v1230 = vpop.xlane.xlu0 %1229
        %v1231 = vsel %vm932, %v1217, 0.0
        %1232 = vadd.xlane.f32.xlu0 %v1231
        %v1233 = vpop.xlane.xlu0 %1232
        %v1234 = vsel %vm932, %v1218, 0.0
        %1235 = vadd.xlane.f32.xlu0 %v1234
        %v1236 = vpop.xlane.xlu0 %1235
        %v1237 = vsel %vm932, %v1219, 0.0
        %1238 = vadd.xlane.f32.xlu0 %v1237
        %v1239 = vpop.xlane.xlu0 %1238
        %v1240 = vsel %vm932, %v1220, 0.0
        %1241 = vadd.xlane.f32.xlu0 %v1240
        %v1242 = vpop.xlane.xlu0 %1241
        %v1243 = vsel %vm932, %v1221, 0.0
        %1244 = vadd.xlane.f32.xlu0 %v1243
        %v1245 = vpop.xlane.xlu0 %1244
        %v1246 = vmul.f32 %v1224, %v306
        %v1247 = vmul.f32 %v1227, %v307
        %v1248 = vmul.f32 %v1230, %v308
        %v1249 = vmul.f32 %v1233, %v309
        %v1250 = vmul.f32 %v1236, %v310
        %v1251 = vmul.f32 %v1239, %v311
        %v1252 = vmul.f32 %v1242, %v312
        %v1253 = vmul.f32 %v1245, %v313
        %v1254 = vsel %vm323, %v1246, 0.0
        %v1255 = vrot.slane %v1254, 4
        %v1256 = vadd.f32 %v1254, %v1255
        %v1257 = vrot.slane %v1256, 2
        %v1258 = vadd.f32 %v1256, %v1257
        %v1259 = vrot.slane %v1258, 1
        %v1260 = vadd.f32 %v1258, %v1259
        %v1261 = vsel %vm323, %v1247, 0.0
        %v1262 = vrot.slane %v1261, 4
        %v1263 = vadd.f32 %v1261, %v1262
        %v1264 = vrot.slane %v1263, 2
        %v1265 = vadd.f32 %v1263, %v1264
        %v1266 = vrot.slane %v1265, 1
        %v1267 = vadd.f32 %v1265, %v1266
        %v1268 = vsel %vm323, %v1248, 0.0
        %v1269 = vrot.slane %v1268, 4
        %v1270 = vadd.f32 %v1268, %v1269
        %v1271 = vrot.slane %v1270, 2
        %v1272 = vadd.f32 %v1270, %v1271
        %v1273 = vrot.slane %v1272, 1
        %v1274 = vadd.f32 %v1272, %v1273
        %v1275 = vsel %vm323, %v1249, 0.0
        %v1276 = vrot.slane %v1275, 4
        %v1277 = vadd.f32 %v1275, %v1276
        %v1278 = vrot.slane %v1277, 2
        %v1279 = vadd.f32 %v1277, %v1278
        %v1280 = vrot.slane %v1279, 1
        %v1281 = vadd.f32 %v1279, %v1280
        %v1282 = vsel %vm323, %v1250, 0.0
        %v1283 = vrot.slane %v1282, 4
        %v1284 = vadd.f32 %v1282, %v1283
        %v1285 = vrot.slane %v1284, 2
        %v1286 = vadd.f32 %v1284, %v1285
        %v1287 = vrot.slane %v1286, 1
        %v1288 = vadd.f32 %v1286, %v1287
        %v1289 = vsel %vm323, %v1251, 0.0
        %v1290 = vrot.slane %v1289, 4
        %v1291 = vadd.f32 %v1289, %v1290
        %v1292 = vrot.slane %v1291, 2
        %v1293 = vadd.f32 %v1291, %v1292
        %v1294 = vrot.slane %v1293, 1
        %v1295 = vadd.f32 %v1293, %v1294
        %v1296 = vsel %vm323, %v1252, 0.0
        %v1297 = vrot.slane %v1296, 4
        %v1298 = vadd.f32 %v1296, %v1297
        %v1299 = vrot.slane %v1298, 2
        %v1300 = vadd.f32 %v1298, %v1299
        %v1301 = vrot.slane %v1300, 1
        %v1302 = vadd.f32 %v1300, %v1301
        %v1303 = vsel %vm323, %v1253, 0.0
        %v1304 = vrot.slane %v1303, 4
        %v1305 = vadd.f32 %v1303, %v1304
        %v1306 = vrot.slane %v1305, 2
        %v1307 = vadd.f32 %v1305, %v1306
        %v1308 = vrot.slane %v1307, 1
        %v1309 = vadd.f32 %v1307, %v1308
        %v1310 = vld [vmem:[%s3] sm:$0xff]
        %v1311 = vld [vmem:[%s3 + $0x8] sm:$0xff]
        %v1312 = vld [vmem:[%s3 + $0x10] sm:$0xff]
        %v1313 = vld [vmem:[%s3 + $0x18] sm:$0xff]
        %v1314 = vld [vmem:[%s3 + $0x20] sm:$0xff]
        %v1315 = vld [vmem:[%s3 + $0x28] sm:$0xff]
        %v1316 = vld [vmem:[%s3 + $0x30] sm:$0xff]
        %v1317 = vld [vmem:[%s3 + $0x38] sm:$0xff]
        %v1318 = vld [vmem:[#allocation2] sm:$0xff]
        %v1319 = vld [vmem:[#allocation2 + $0x8] sm:$0xff]
        %v1320 = vld [vmem:[#allocation2 + $0x10] sm:$0xff]
        %v1321 = vld [vmem:[#allocation2 + $0x18] sm:$0xff]
        %v1322 = vld [vmem:[#allocation2 + $0x20] sm:$0xff]
        %v1323 = vld [vmem:[#allocation2 + $0x28] sm:$0xff]
        %v1324 = vld [vmem:[#allocation2 + $0x30] sm:$0xff]
        %v1325 = vld [vmem:[#allocation2 + $0x38] sm:$0xff]
        %v1327 = vsel %vm323, %v322, 0
        %1329 = vmatprep.subr.mxu0 0.0
        %1330 = vmatpush1.msra.mxu0 %v1318
        %1331 = vmatprep.subr.mxu0 0.0
        %1332 = vmatpush1.msra.mxu0 %v1319
        %1333 = vmatprep.subr.mxu0 0.0
        %1334 = vmatpush1.msra.mxu0 %v1320
        %1335 = vmatprep.subr.mxu0 0.0
        %1336 = vmatpush1.msra.mxu0 %v1321
        %1337 = vmatprep.subr.mxu0 0.0
        %1338 = vmatpush1.msra.mxu0 %v1322
        %1339 = vmatprep.subr.mxu0 0.0
        %1340 = vmatpush1.msra.mxu0 %v1323
        %1341 = vmatprep.subr.mxu0 0.0
        %1342 = vmatpush1.msra.mxu0 %v1324
        %1343 = vmatprep.subr.mxu0 0.0
        %1344 = vmatpush1.msra.mxu0 %v1325
        %1345 = vmatprep.subr.mxu0 0.0
        %1346 = vmatpush1.msra.mxu0 0.0
        %1347 = vmatprep.subr.mxu0 0.0
        %1348 = vmatpush1.msra.mxu0 0.0
        %1349 = vmatprep.subr.mxu0 0.0
        %1350 = vmatpush1.msra.mxu0 0.0
        %1351 = vmatprep.subr.mxu0 0.0
        %1352 = vmatpush1.msra.mxu0 0.0
        %1353 = vmatprep.subr.mxu0 0.0
        %1354 = vmatpush1.msra.mxu0 0.0
        %1355 = vmatprep.subr.mxu0 0.0
        %1356 = vmatpush1.msra.mxu0 0.0
        %1357 = vmatprep.subr.mxu0 0.0
        %1358 = vmatpush1.msra.mxu0 0.0
        %1359 = vmatprep.subr.mxu0 0.0
        %1360 = vmatpush1.msra.mxu0 0.0
        %1361 = vmatprep.subr.mxu0 0.0
        %1362 = vmatpush1.msra.mxu0 0.0
        %1363 = vmatprep.subr.mxu0 0.0
        %1364 = vmatpush1.msra.mxu0 0.0
        %1365 = vmatprep.subr.mxu0 0.0
        %1366 = vmatpush1.msra.mxu0 0.0
        %1367 = vmatprep.subr.mxu0 0.0
        %1368 = vmatpush1.msra.mxu0 0.0
        %1369 = vmatprep.subr.mxu0 0.0
        %1370 = vmatpush1.msra.mxu0 0.0
        %1371 = vmatprep.subr.mxu0 0.0
        %1372 = vmatpush1.msra.mxu0 0.0
        %1373 = vmatprep.subr.mxu0 0.0
        %1374 = vmatpush1.msra.mxu0 0.0
        %1375 = vmatprep.subr.mxu0 0.0
        %1376 = vmatpush1.msra.mxu0 0.0
        %1377 = vmatprep.subr.mxu0 0.0
        %1378 = vmatpush1.msra.mxu0 0.0
        %1379 = vmatprep.subr.mxu0 0.0
        %1380 = vmatpush1.msra.mxu0 0.0
        %1381 = vmatprep.subr.mxu0 0.0
        %1382 = vmatpush1.msra.mxu0 0.0
        %1383 = vmatprep.subr.mxu0 0.0
        %1384 = vmatpush1.msra.mxu0 0.0
        %1385 = vmatprep.subr.mxu0 0.0
        %1386 = vmatpush1.msra.mxu0 0.0
        %1387 = vmatprep.subr.mxu0 0.0
        %1388 = vmatpush1.msra.mxu0 0.0
        %1389 = vmatprep.subr.mxu0 0.0
        %1390 = vmatpush1.msra.mxu0 0.0
        %1391 = vmatprep.subr.mxu0 0.0
        %1392 = vmatpush1.msra.mxu0 0.0
        %1393 = vmatprep.mubr.f32.mxu0 0.0
        %1394 = vmatmul.mubr.f32.gmra.mrb[0].mxu0 %v1327
        %v1395 = vpop.f32.mrb[0].mxu0
        %v1396 = vadd.f32 0.0, %v1395
        %v1397 = vpop.f32.mrb[0].mxu0
        %1398 = vdwg.mxu0
        %vm1407 = vcmask 1041409
        %v1408 = vsel %vm1407, %v1267, %v1260
        %vm1409 = vcmask 1042434
        %v1410 = vsel %vm1409, %v1274, %v1408
        %vm1411 = vcmask 1043459
        %v1412 = vsel %vm1411, %v1281, %v1410
        %vm1413 = vcmask 1044484
        %v1414 = vsel %vm1413, %v1288, %v1412
        %vm1415 = vcmask 1045509
        %v1416 = vsel %vm1415, %v1295, %v1414
        %vm1417 = vcmask 1046534
        %v1418 = vsel %vm1417, %v1302, %v1416
        %vm1419 = vcmask 1047559
        %v1420 = vsel %vm1419, %v1309, %v1418
        %v1421 = vsel %vm323, %v1420, 0
        %1423 = vmatprep.subr.mxu0 0.0
        %1424 = vmatpush1.msra.mxu0 %v1310
        %1425 = vmatprep.subr.mxu0 0.0
        %1426 = vmatpush1.msra.mxu0 %v1311
        %1427 = vmatprep.subr.mxu0 0.0
        %1428 = vmatpush1.msra.mxu0 %v1312
        %1429 = vmatprep.subr.mxu0 0.0
        %1430 = vmatpush1.msra.mxu0 %v1313
        %1431 = vmatprep.subr.mxu0 0.0
        %1432 = vmatpush1.msra.mxu0 %v1314
        %1433 = vmatprep.subr.mxu0 0.0
        %1434 = vmatpush1.msra.mxu0 %v1315
        %1435 = vmatprep.subr.mxu0 0.0
        %1436 = vmatpush1.msra.mxu0 %v1316
        %1437 = vmatprep.subr.mxu0 0.0
        %1438 = vmatpush1.msra.mxu0 %v1317
        %1439 = vmatprep.subr.mxu0 0.0
        %1440 = vmatpush1.msra.mxu0 0.0
        %1441 = vmatprep.subr.mxu0 0.0
        %1442 = vmatpush1.msra.mxu0 0.0
        %1443 = vmatprep.subr.mxu0 0.0
        %1444 = vmatpush1.msra.mxu0 0.0
        %1445 = vmatprep.subr.mxu0 0.0
        %1446 = vmatpush1.msra.mxu0 0.0
        %1447 = vmatprep.subr.mxu0 0.0
        %1448 = vmatpush1.msra.mxu0 0.0
        %1449 = vmatprep.subr.mxu0 0.0
        %1450 = vmatpush1.msra.mxu0 0.0
        %1451 = vmatprep.subr.mxu0 0.0
        %1452 = vmatpush1.msra.mxu0 0.0
        %1453 = vmatprep.subr.mxu0 0.0
        %1454 = vmatpush1.msra.mxu0 0.0
        %1455 = vmatprep.subr.mxu0 0.0
        %1456 = vmatpush1.msra.mxu0 0.0
        %1457 = vmatprep.subr.mxu0 0.0
        %1458 = vmatpush1.msra.mxu0 0.0
        %1459 = vmatprep.subr.mxu0 0.0
        %1460 = vmatpush1.msra.mxu0 0.0
        %1461 = vmatprep.subr.mxu0 0.0
        %1462 = vmatpush1.msra.mxu0 0.0
        %1463 = vmatprep.subr.mxu0 0.0
        %1464 = vmatpush1.msra.mxu0 0.0
        %1465 = vmatprep.subr.mxu0 0.0
        %1466 = vmatpush1.msra.mxu0 0.0
        %1467 = vmatprep.subr.mxu0 0.0
        %1468 = vmatpush1.msra.mxu0 0.0
        %1469 = vmatprep.subr.mxu0 0.0
        %1470 = vmatpush1.msra.mxu0 0.0
        %1471 = vmatprep.subr.mxu0 0.0
        %1472 = vmatpush1.msra.mxu0 0.0
        %1473 = vmatprep.subr.mxu0 0.0
        %1474 = vmatpush1.msra.mxu0 0.0
        %1475 = vmatprep.subr.mxu0 0.0
        %1476 = vmatpush1.msra.mxu0 0.0
        %1477 = vmatprep.subr.mxu0 0.0
        %1478 = vmatpush1.msra.mxu0 0.0
        %1479 = vmatprep.subr.mxu0 0.0
        %1480 = vmatpush1.msra.mxu0 0.0
        %1481 = vmatprep.subr.mxu0 0.0
        %1482 = vmatpush1.msra.mxu0 0.0
        %1483 = vmatprep.subr.mxu0 0.0
        %1484 = vmatpush1.msra.mxu0 0.0
        %1485 = vmatprep.subr.mxu0 0.0
        %1486 = vmatpush1.msra.mxu0 0.0
        %1487 = vmatprep.mubr.f32.mxu0 0.0
        %1488 = vmatmul.mubr.f32.gmra.mrb[0].mxu0 %v1421
        %v1489 = vpop.f32.mrb[0].mxu0
        %v1490 = vadd.f32 %v1396, %v1489
        %v1491 = vpop.f32.mrb[0].mxu0
        %1492 = vdwg.mxu0
        %v1493 = vld [vmem:[%s5] sm:$0x1]
        %v1495 = vlaneseq
        %v1496 = vshrl.u32 %v1495, 7
        %v1497 = vsub.s32 0, %v1496
        %v1498 = vrot.slane %v1493, %v1497
        %v1500 = vadd.f32 %v1490, %v1498
        %1501 = vst [vmem:[%s289] sm:$0xff] %v1500
        %s1502 = sand.u32 %s170, 1
        %s1503 = scalar_lea.sflag [#allocation4], %s1502
        %s1504 = sand.u32 %s170, 1
        %s1505 = smul.addr %s1504, 8
        %s1506 = scalar_lea.vmem [#allocation5], %s1505
        // Predicated region
        $region49: #{tpu_custom_call.1} parent=43 // pred_check
          %p1507 = pneg %p180
        $region50: #{tpu_custom_call.1} parent=43 // pred_check_branch
          %1509 = sbr.rel (%p1507) target = $region52
        $region51: #{tpu_custom_call.1} parent=43 // pred_region
          %s1511 = ssub.s32 128, 128
          %1512 = vsyncadd %s1503, %s1511
          %s1513 = smul.addr %s21, 128
          %s1514 = scalar_lea.hbm %s6, %s1513
          %s1516 = sshll.u32 %s1506, 4
          %s1517 = int_to_ptr.vmem [resolvable:$true] %s1516
          %1519 = dma.vmem_to_hbm [thread:$0]  %s1517, 128, %s1514, %s1503
        $region52: #{tpu_custom_call.1} parent=43 // pred_fallthru
          _
      $region44: #{tpu_custom_call.1} parent=5 // pred_fallthru
        _
      %p1520 = scmp.le.s32.totalorder 2, %s16
      // Predicated region
      $region53: #{tpu_custom_call.1} parent=5 // pred_check
        %p1521 = pneg %p1520
      $region54: #{tpu_custom_call.1} parent=5 // pred_check_branch
        %1523 = sbr.rel (%p1521) target = $region56
      $region55: #{tpu_custom_call.1} parent=5 // pred_region
        %s1524 = ssub.s32 %s16, 2
        // Predicated region
        $region57: #{tpu_custom_call.1} parent=55 // pred_check
          %p1525 = pneg %p186
        $region58: #{tpu_custom_call.1} parent=55 // pred_check_branch
          %1527 = sbr.rel (%p1525) target = $region60
        $region59: #{tpu_custom_call.1} parent=55 // pred_region
          %s1528 = sand.u32 %s171, 1
          %s1529 = scalar_lea.sflag [#allocation4], %s1528
          %s1530 = sand.u32 %s171, 1
          %s1531 = smul.addr %s1530, 8
          %s1532 = scalar_lea.vmem [#allocation5], %s1531
          %1533 = dma.done %s1529, 128
        $region60: #{tpu_custom_call.1} parent=55 // pred_fallthru
          _
      $region56: #{tpu_custom_call.1} parent=5 // pred_fallthru
        _
    $region6: #{tpu_custom_call.1} parent=1 // loop_footer
      %s20 = sadd.s32 1, %s16
    $region7: #{tpu_custom_call.1} parent=1 // loop_footer_branch
      %15 = sbr.rel target = $region3
    $region8: #{tpu_custom_call.1} parent=1 // loop_exit
      _
    %1534 = vsyncpa [#allocation3], 1
    %s1535 = scalar_lea.sflag [#allocation3], 1
    %1536 = vsyncpa %s1535, 1
    %1537 = vsyncpa [#allocation4], 1
    %s1538 = scalar_lea.sflag [#allocation4], 1
    %1539 = vsyncpa %s1538, 1

</llo_original>
